<compile_context>
chip_gen: v7x
topology: tpu7x:2x2x1
jax: 0.10.0
libtpu: 0.0.40
codegen_flags: <defaults>
</compile_context>

<pallas_src>
import jax
import jax.numpy as jnp
from jax.experimental import pallas as pl
from jax.experimental.pallas import tpu as pltpu


def _mha_kernel(x_ref, wq_ref, wk_ref, wv_ref, wo_ref,
                bq_ref, bk_ref, bv_ref, bo_ref,
                out_ref, acc_ref):
    """One (batch, query-tile, head) grid step.

    x_ref        : (S, D)    activations for this batch element (compute dtype)
    w{q,k,v}_ref : (D, d_k)  this head's projection weight slice (compute dtype)
    wo_ref       : (d_k, D)  this head's slice of the output projection
    b{q,k,v}_ref : (1, d_k)  f32 biases ;  bo_ref : (1, D) f32
    out_ref      : (TQ, D)   output tile (block index constant across heads)
    acc_ref      : (TQ, D)   f32 scratch accumulator over the head axis
    """
    qi = pl.program_id(1)
    h = pl.program_id(2)

    tq = out_ref.shape[0]
    d_k = wq_ref.shape[-1]
    cdt = wq_ref.dtype                       # MXU input dtype (bf16 by default)
    scale = 1.0 / (float(d_k) ** 0.5)

    @pl.when(h == 0)
    def _init():
        acc_ref[...] = jnp.zeros_like(acc_ref)

    row0 = pl.multiple_of(qi * tq, tq)
    x_q = x_ref[pl.ds(row0, tq), :]          # (TQ, D) query rows of this tile
    x_kv = x_ref[...]                        # (S, D)  full sequence for K / V

    # Projections: K = D contraction on the MXU, f32 accumulation.
    q = jnp.dot(x_q, wq_ref[...], preferred_element_type=jnp.float32) + bq_ref[...]
    k = jnp.dot(x_kv, wk_ref[...], preferred_element_type=jnp.float32) + bk_ref[...]
    v = jnp.dot(x_kv, wv_ref[...], preferred_element_type=jnp.float32) + bv_ref[...]

    # Fold 1/sqrt(d_k) into q (TQ*d_k elements instead of TQ*S).
    q = q * scale

    # Q @ K^T without materializing a transpose: contract d_k on both operands.
    s = jax.lax.dot_general(
        q.astype(cdt), k.astype(cdt),
        dimension_numbers=(((1,), (1,)), ((), ())),
        preferred_element_type=jnp.float32)               # (TQ, S)

    # Numerically stable softmax in f32; reciprocal goes to the EUP slot.
    m = jnp.max(s, axis=-1, keepdims=True)
    p = jnp.exp(s - m)
    denom = jnp.sum(p, axis=-1, keepdims=True)
    p = p * pl.reciprocal(denom, approx=True)

    ctx = jnp.dot(p.astype(cdt), v.astype(cdt),
                  preferred_element_type=jnp.float32)      # (TQ, d_k)

    # Output projection fused per head and accumulated (no concatenate).
    acc_ref[...] += jnp.dot(ctx.astype(cdt), wo_ref[...],
                            preferred_element_type=jnp.float32)   # (TQ, D)

    @pl.when(h == pl.num_programs(2) - 1)
    def _finalize():
        out_ref[...] = (acc_ref[...] + bo_ref[...]).astype(out_ref.dtype)


def multi_head_attention(x, params, *, num_heads, tq=128,
                         compute_dtype=jnp.bfloat16):
    """x: (B, S, D) f32.  params: torch-layout W_{q,k,v,o} (D,D) and b_* (D,)."""
    B, S, D = x.shape
    assert D % num_heads == 0
    d_k = D // num_heads

    tq = min(tq, S)
    if S % tq != 0:
        tq = S                      # fall back to a single query tile
    n_q = S // tq

    cdt = compute_dtype

    # torch nn.Linear: y = x @ W.T + b  with W (out, in).  Pre-transpose and
    # split the OUTPUT dim of W_q/k/v (and the INPUT dim of W_o) into heads so
    # the kernel only ever sees 2-D (D, d_k) / (d_k, D) weight slices.
    def _split_in_proj(w):          # (D_out, D_in) -> (H, D_in, d_k)
        return w.T.reshape(D, num_heads, d_k).transpose(1, 0, 2).astype(cdt)

    wq_h = _split_in_proj(params["W_q"])
    wk_h = _split_in_proj(params["W_k"])
    wv_h = _split_in_proj(params["W_v"])
    wo_h = params["W_o"].T.reshape(num_heads, d_k, D).astype(cdt)   # (H, d_k, D)

    bq_h = params["b_q"].reshape(num_heads, 1, d_k).astype(jnp.float32)
    bk_h = params["b_k"].reshape(num_heads, 1, d_k).astype(jnp.float32)
    bv_h = params["b_v"].reshape(num_heads, 1, d_k).astype(jnp.float32)
    bo = params["b_o"].reshape(1, D).astype(jnp.float32)

    x_c = x.astype(cdt)             # halve HBM/VMEM bytes for x when bf16

    w_spec = pl.BlockSpec((None, D, d_k), lambda b, qi, h: (h, 0, 0))
    wo_spec = pl.BlockSpec((None, d_k, D), lambda b, qi, h: (h, 0, 0))
    b_spec = pl.BlockSpec((None, 1, d_k), lambda b, qi, h: (h, 0, 0))

    return pl.pallas_call(
        _mha_kernel,
        out_shape=jax.ShapeDtypeStruct((B, S, D), x.dtype),
        grid_spec=pltpu.PrefetchScalarGridSpec(
            num_scalar_prefetch=0,
            grid=(B, n_q, num_heads),           # head axis innermost (reduction)
            in_specs=[
                pl.BlockSpec((None, S, D), lambda b, qi, h: (b, 0, 0)),   # x
                w_spec, w_spec, w_spec, wo_spec,
                b_spec, b_spec, b_spec,
                pl.BlockSpec((1, D), lambda b, qi, h: (0, 0)),            # b_o
            ],
            out_specs=pl.BlockSpec((None, tq, D), lambda b, qi, h: (b, qi, 0)),
            scratch_shapes=[pltpu.VMEM((tq, D), jnp.float32)],
        ),
        compiler_params=pltpu.CompilerParams(
            dimension_semantics=("parallel", "parallel", "arbitrary"),
            vmem_limit_bytes=32 * 1024 * 1024,
        ),
    )(x_c, wq_h, wk_h, wv_h, wo_h, bq_h, bk_h, bv_h, bo)


def _reference_mha(x, params, *, num_heads):
    """Pure-JAX f32 reference mirroring the PyTorch forward exactly."""
    B, S, D = x.shape
    d_k = D // num_heads

    def lin(t, w, b):
        return jnp.einsum("bsd,od->bso", t, w) + b

    q = lin(x, params["W_q"], params["b_q"]).reshape(B, S, num_heads, d_k).transpose(0, 2, 1, 3)
    k = lin(x, params["W_k"], params["b_k"]).reshape(B, S, num_heads, d_k).transpose(0, 2, 1, 3)
    v = lin(x, params["W_v"], params["b_v"]).reshape(B, S, num_heads, d_k).transpose(0, 2, 1, 3)
    scores = jnp.einsum("bhqd,bhkd->bhqk", q, k) / jnp.sqrt(jnp.float32(d_k))
    attn = jax.nn.softmax(scores, axis=-1)
    ctx = jnp.einsum("bhqk,bhkd->bhqd", attn, v)
    ctx = ctx.transpose(0, 2, 1, 3).reshape(B, S, D)
    return lin(ctx, params["W_o"], params["b_o"])


if __name__ == "__main__":
    d_model, num_heads = 128, 4          # d_k = 32; D lane-dense (multiple of 128)
    B, S = 2, 128

    key = jax.random.PRNGKey(0)
    keys = jax.random.split(key, 9)
    wscale = 1.0 / jnp.sqrt(jnp.float32(d_model))
    params = {
        # torch nn.Linear layout: weight (out_features, in_features), bias (out,)
        "W_q": jax.random.normal(keys[0], (d_model, d_model), jnp.float32) * wscale,
        "W_k": jax.random.normal(keys[1], (d_model, d_model), jnp.float32) * wscale,
        "W_v": jax.random.normal(keys[2], (d_model, d_model), jnp.float32) * wscale,
        "W_o": jax.random.normal(keys[3], (d_model, d_model), jnp.float32) * wscale,
        "b_q": jax.random.normal(keys[4], (d_model,), jnp.float32) * 0.01,
        "b_k": jax.random.normal(keys[5], (d_model,), jnp.float32) * 0.01,
        "b_v": jax.random.normal(keys[6], (d_model,), jnp.float32) * 0.01,
        "b_o": jax.random.normal(keys[7], (d_model,), jnp.float32) * 0.01,
    }
    x = jax.random.normal(keys[8], (B, S, d_model), jnp.float32)

    ref = _reference_mha(x, params, num_heads=num_heads)

    # f32 MXU-input path (tighter check; slack covers the approx EUP reciprocal).
    out_f32 = multi_head_attention(x, params, num_heads=num_heads, tq=64,
                                   compute_dtype=jnp.float32)
    out_f32 = jax.block_until_ready(out_f32)
    assert out_f32.shape == (B, S, d_model)
    assert jnp.allclose(out_f32, ref, atol=2e-2, rtol=2e-2), "f32 path mismatch"

    # Default bf16 MXU-input path (f32 accumulation / f32 softmax); looser
    # tolerance accounts for bf16 operand rounding through 4 chained matmuls.
    out_bf16 = multi_head_attention(x, params, num_heads=num_heads, tq=64)
    out_bf16 = jax.block_until_ready(out_bf16)
    assert out_bf16.shape == (B, S, d_model)
    assert jnp.allclose(out_bf16, ref, atol=1.5e-1, rtol=5e-2), "bf16 path mismatch"

    print("KERNEL_OK")
</pallas_src>

<mosaic_0001>
module attributes {stable_mosaic.version = 11 : i64} {
  func.func @_mha_kernel(%arg0: i32, %arg1: i32, %arg2: i32, %arg3: memref<1x128x128xf32, #tpu.memory_space<vmem>>, %arg4: memref<1x128x32xf32, #tpu.memory_space<vmem>>, %arg5: memref<1x128x32xf32, #tpu.memory_space<vmem>>, %arg6: memref<1x128x32xf32, #tpu.memory_space<vmem>>, %arg7: memref<1x32x128xf32, #tpu.memory_space<vmem>>, %arg8: memref<1x1x32xf32, #tpu.memory_space<vmem>>, %arg9: memref<1x1x32xf32, #tpu.memory_space<vmem>>, %arg10: memref<1x1x32xf32, #tpu.memory_space<vmem>>, %arg11: memref<1x128xf32, #tpu.memory_space<vmem>>, %arg12: memref<1x64x128xf32, #tpu.memory_space<vmem>>, %arg13: memref<64x128xf32, #tpu.memory_space<vmem>>) attributes {dimension_semantics = [#tpu.dimension_semantics<parallel>, #tpu.dimension_semantics<parallel>, #tpu.dimension_semantics<arbitrary>], iteration_bounds = array<i64: 2, 2, 4>, scalar_prefetch = 0 : i64, scratch_operands = 1 : i64, tpu.core_type = #tpu.core_type<tc>, window_params = [{transform_indices = @transform_0, window_bounds = array<i64: 1, 128, 128>}, {transform_indices = @transform_1, window_bounds = array<i64: 1, 128, 32>}, {transform_indices = @transform_2, window_bounds = array<i64: 1, 128, 32>}, {transform_indices = @transform_3, window_bounds = array<i64: 1, 128, 32>}, {transform_indices = @transform_4, window_bounds = array<i64: 1, 32, 128>}, {transform_indices = @transform_5, window_bounds = array<i64: 1, 1, 32>}, {transform_indices = @transform_6, window_bounds = array<i64: 1, 1, 32>}, {transform_indices = @transform_7, window_bounds = array<i64: 1, 1, 32>}, {pipeline_mode = #tpu.pipeline_mode<synchronous>, transform_indices = @transform_8, window_bounds = array<i64: 1, 128>}, {transform_indices = @transform_9, window_bounds = array<i64: 1, 64, 128>}]} {
    %c0_i32 = arith.constant 0 : i32
    %0 = arith.cmpi eq, %arg2, %c0_i32 : i32
    %1 = arith.extui %0 : i1 to i32
    %c0_i32_0 = arith.constant 0 : i32
    %2 = arith.cmpi ne, %1, %c0_i32_0 : i32
    scf.if %2 {
      %cst_39 = arith.constant 0.000000e+00 : f32
      %54 = vector.broadcast %cst_39 : f32 to vector<64x128xf32>
      %c0_40 = arith.constant 0 : index
      %c0_41 = arith.constant 0 : index
      %55 = vector.load %arg13[%c0_40, %c0_41] : memref<64x128xf32, #tpu.memory_space<vmem>>, vector<64x128xf32>
      tpu.vector_store %arg13[%c0_40, %c0_41], %54 {strides = array<i32>} : memref<64x128xf32, #tpu.memory_space<vmem>>, vector<64x128xf32>,
    } else {
    }
    %c64_i32 = arith.constant 64 : i32
    %3 = arith.muli %arg1, %c64_i32 : i32
    %4 = tpu.assume_multiple %3, 64 : i32
    %c0 = arith.constant 0 : index
    %5 = arith.index_cast %4 : i32 to index
    %c0_1 = arith.constant 0 : index
    %6 = vector.load %arg3[%c0, %5, %c0_1] : memref<1x128x128xf32, #tpu.memory_space<vmem>>, vector<1x64x128xf32>
    %7 = vector.shape_cast %6 : vector<1x64x128xf32> to vector<64x128xf32>
    %c0_2 = arith.constant 0 : index
    %c0_3 = arith.constant 0 : index
    %c0_4 = arith.constant 0 : index
    %8 = vector.load %arg3[%c0_2, %c0_3, %c0_4] : memref<1x128x128xf32, #tpu.memory_space<vmem>>, vector<1x128x128xf32>
    %9 = vector.shape_cast %8 : vector<1x128x128xf32> to vector<128x128xf32>
    %c0_5 = arith.constant 0 : index
    %c0_6 = arith.constant 0 : index
    %c0_7 = arith.constant 0 : index
    %10 = vector.load %arg4[%c0_5, %c0_6, %c0_7] : memref<1x128x32xf32, #tpu.memory_space<vmem>>, vector<1x128x32xf32>
    %11 = vector.shape_cast %10 : vector<1x128x32xf32> to vector<128x32xf32>
    %cst = arith.constant dense<0.000000e+00> : vector<64x32xf32>
    %12 = tpu.matmul %7, %11, %cst {dimension_numbers = #tpu.dot_dimension_numbers<[1], [0], [0], [1], [0, 0, 1, 1], [], []>} : vector<64x128xf32>, vector<128x32xf32>, vector<64x32xf32> -> vector<64x32xf32>
    %c0_8 = arith.constant 0 : index
    %c0_9 = arith.constant 0 : index
    %c0_10 = arith.constant 0 : index
    %13 = vector.load %arg8[%c0_8, %c0_9, %c0_10] : memref<1x1x32xf32, #tpu.memory_space<vmem>>, vector<1x1x32xf32>
    %14 = vector.shape_cast %13 : vector<1x1x32xf32> to vector<1x32xf32>
    %15 = vector.broadcast %14 : vector<1x32xf32> to vector<64x32xf32>
    %16 = arith.addf %12, %15 : vector<64x32xf32>
    %c0_11 = arith.constant 0 : index
    %c0_12 = arith.constant 0 : index
    %c0_13 = arith.constant 0 : index
    %17 = vector.load %arg5[%c0_11, %c0_12, %c0_13] : memref<1x128x32xf32, #tpu.memory_space<vmem>>, vector<1x128x32xf32>
    %18 = vector.shape_cast %17 : vector<1x128x32xf32> to vector<128x32xf32>
    %cst_14 = arith.constant dense<0.000000e+00> : vector<128x32xf32>
    %19 = tpu.matmul %9, %18, %cst_14 {dimension_numbers = #tpu.dot_dimension_numbers<[1], [0], [0], [1], [0, 0, 1, 1], [], []>} : vector<128x128xf32>, vector<128x32xf32>, vector<128x32xf32> -> vector<128x32xf32>
    %c0_15 = arith.constant 0 : index
    %c0_16 = arith.constant 0 : index
    %c0_17 = arith.constant 0 : index
    %20 = vector.load %arg9[%c0_15, %c0_16, %c0_17] : memref<1x1x32xf32, #tpu.memory_space<vmem>>, vector<1x1x32xf32>
    %21 = vector.shape_cast %20 : vector<1x1x32xf32> to vector<1x32xf32>
    %22 = vector.broadcast %21 : vector<1x32xf32> to vector<128x32xf32>
    %23 = arith.addf %19, %22 : vector<128x32xf32>
    %c0_18 = arith.constant 0 : index
    %c0_19 = arith.constant 0 : index
    %c0_20 = arith.constant 0 : index
    %24 = vector.load %arg6[%c0_18, %c0_19, %c0_20] : memref<1x128x32xf32, #tpu.memory_space<vmem>>, vector<1x128x32xf32>
    %25 = vector.shape_cast %24 : vector<1x128x32xf32> to vector<128x32xf32>
    %cst_21 = arith.constant dense<0.000000e+00> : vector<128x32xf32>
    %26 = tpu.matmul %9, %25, %cst_21 {dimension_numbers = #tpu.dot_dimension_numbers<[1], [0], [0], [1], [0, 0, 1, 1], [], []>} : vector<128x128xf32>, vector<128x32xf32>, vector<128x32xf32> -> vector<128x32xf32>
    %c0_22 = arith.constant 0 : index
    %c0_23 = arith.constant 0 : index
    %c0_24 = arith.constant 0 : index
    %27 = vector.load %arg10[%c0_22, %c0_23, %c0_24] : memref<1x1x32xf32, #tpu.memory_space<vmem>>, vector<1x1x32xf32>
    %28 = vector.shape_cast %27 : vector<1x1x32xf32> to vector<1x32xf32>
    %29 = vector.broadcast %28 : vector<1x32xf32> to vector<128x32xf32>
    %30 = arith.addf %26, %29 : vector<128x32xf32>
    %cst_25 = arith.constant 0.176776692 : f32
    %31 = vector.broadcast %cst_25 : f32 to vector<64x32xf32>
    %32 = arith.mulf %16, %31 : vector<64x32xf32>
    %cst_26 = arith.constant dense<0.000000e+00> : vector<64x128xf32>
    %33 = tpu.matmul %32, %23, %cst_26 {dimension_numbers = #tpu.dot_dimension_numbers<[1], [1], [0], [0], [0, 0, 1, 0], [], []>} : vector<64x32xf32>, vector<128x32xf32>, vector<64x128xf32> -> vector<64x128xf32>
    %cst_27 = arith.constant dense<0xFF800000> : vector<64xf32>
    %34 = vector.multi_reduction <maximumf>, %33, %cst_27 [1] : vector<64x128xf32> to vector<64xf32>
    %35 = vector.shape_cast %34 : vector<64xf32> to vector<64x1xf32>
    %36 = vector.broadcast %35 : vector<64x1xf32> to vector<64x128xf32>
    %37 = arith.subf %33, %36 : vector<64x128xf32>
    %38 = math.exp %37 : vector<64x128xf32>
    %cst_28 = arith.constant dense<0.000000e+00> : vector<64xf32>
    %39 = vector.multi_reduction <add>, %38, %cst_28 [1] : vector<64x128xf32> to vector<64xf32>
    %40 = vector.shape_cast %39 : vector<64xf32> to vector<64x1xf32>
    %41 = tpu.reciprocal %40 {approx = true} : vector<64x1xf32> -> vector<64x1xf32>
    %42 = vector.broadcast %41 : vector<64x1xf32> to vector<64x128xf32>
    %43 = arith.mulf %38, %42 : vector<64x128xf32>
    %cst_29 = arith.constant dense<0.000000e+00> : vector<64x32xf32>
    %44 = tpu.matmul %43, %30, %cst_29 {dimension_numbers = #tpu.dot_dimension_numbers<[1], [0], [0], [1], [0, 0, 1, 1], [], []>} : vector<64x128xf32>, vector<128x32xf32>, vector<64x32xf32> -> vector<64x32xf32>
    %c0_30 = arith.constant 0 : index
    %c0_31 = arith.constant 0 : index
    %45 = vector.load %arg13[%c0_30, %c0_31] : memref<64x128xf32, #tpu.memory_space<vmem>>, vector<64x128xf32>
    %c0_32 = arith.constant 0 : index
    %c0_33 = arith.constant 0 : index
    %c0_34 = arith.constant 0 : index
    %46 = vector.load %arg7[%c0_32, %c0_33, %c0_34] : memref<1x32x128xf32, #tpu.memory_space<vmem>>, vector<1x32x128xf32>
    %47 = vector.shape_cast %46 : vector<1x32x128xf32> to vector<32x128xf32>
    %cst_35 = arith.constant dense<0.000000e+00> : vector<64x128xf32>
    %48 = tpu.matmul %44, %47, %cst_35 {dimension_numbers = #tpu.dot_dimension_numbers<[1], [0], [0], [1], [0, 0, 1, 1], [], []>} : vector<64x32xf32>, vector<32x128xf32>, vector<64x128xf32> -> vector<64x128xf32>
    %49 = arith.addf %45, %48 : vector<64x128xf32>
    %c0_36 = arith.constant 0 : index
    %c0_37 = arith.constant 0 : index
    %50 = vector.load %arg13[%c0_36, %c0_37] : memref<64x128xf32, #tpu.memory_space<vmem>>, vector<64x128xf32>
    tpu.vector_store %arg13[%c0_36, %c0_37], %49 {strides = array<i32>} : memref<64x128xf32, #tpu.memory_space<vmem>>, vector<64x128xf32>,
    %c3_i32 = arith.constant 3 : i32
    %51 = arith.cmpi eq, %arg2, %c3_i32 : i32
    %52 = arith.extui %51 : i1 to i32
    %c0_i32_38 = arith.constant 0 : i32
    %53 = arith.cmpi ne, %52, %c0_i32_38 : i32
    scf.if %53 {
      %c0_39 = arith.constant 0 : index
      %c0_40 = arith.constant 0 : index
      %54 = vector.load %arg13[%c0_39, %c0_40] : memref<64x128xf32, #tpu.memory_space<vmem>>, vector<64x128xf32>
      %c0_41 = arith.constant 0 : index
      %c0_42 = arith.constant 0 : index
      %55 = vector.load %arg11[%c0_41, %c0_42] : memref<1x128xf32, #tpu.memory_space<vmem>>, vector<1x128xf32>
      %56 = vector.broadcast %55 : vector<1x128xf32> to vector<64x128xf32>
      %57 = arith.addf %54, %56 : vector<64x128xf32>
      %c0_43 = arith.constant 0 : index
      %c0_44 = arith.constant 0 : index
      %c0_45 = arith.constant 0 : index
      %58 = vector.load %arg12[%c0_43, %c0_44, %c0_45] : memref<1x64x128xf32, #tpu.memory_space<vmem>>, vector<1x64x128xf32>
      %59 = vector.shape_cast %58 : vector<1x64x128xf32> to vector<64x128xf32>
      %60 = vector.shape_cast %57 : vector<64x128xf32> to vector<1x64x128xf32>
      tpu.vector_store %arg12[%c0_43, %c0_44, %c0_45], %60 {strides = array<i32>} : memref<1x64x128xf32, #tpu.memory_space<vmem>>, vector<1x64x128xf32>,
    } else {
    }
    return
  }
  func.func @transform_0(%arg0: i32, %arg1: i32, %arg2: i32) -> (i32, i32, i32) {
    %c0_i32 = arith.constant 0 : i32
    %c0_i32_0 = arith.constant 0 : i32
    %c0_i32_1 = arith.constant 0 : i32
    return %arg0, %c0_i32, %c0_i32_0 : i32, i32, i32
  }
  func.func @transform_1(%arg0: i32, %arg1: i32, %arg2: i32) -> (i32, i32, i32) {
    %c0_i32 = arith.constant 0 : i32
    %c0_i32_0 = arith.constant 0 : i32
    %c0_i32_1 = arith.constant 0 : i32
    return %arg2, %c0_i32, %c0_i32_0 : i32, i32, i32
  }
  func.func @transform_2(%arg0: i32, %arg1: i32, %arg2: i32) -> (i32, i32, i32) {
    %c0_i32 = arith.constant 0 : i32
    %c0_i32_0 = arith.constant 0 : i32
    %c0_i32_1 = arith.constant 0 : i32
    return %arg2, %c0_i32, %c0_i32_0 : i32, i32, i32
  }
  func.func @transform_3(%arg0: i32, %arg1: i32, %arg2: i32) -> (i32, i32, i32) {
    %c0_i32 = arith.constant 0 : i32
    %c0_i32_0 = arith.constant 0 : i32
    %c0_i32_1 = arith.constant 0 : i32
    return %arg2, %c0_i32, %c0_i32_0 : i32, i32, i32
  }
  func.func @transform_4(%arg0: i32, %arg1: i32, %arg2: i32) -> (i32, i32, i32) {
    %c0_i32 = arith.constant 0 : i32
    %c0_i32_0 = arith.constant 0 : i32
    %c0_i32_1 = arith.constant 0 : i32
    return %arg2, %c0_i32, %c0_i32_0 : i32, i32, i32
  }
  func.func @transform_5(%arg0: i32, %arg1: i32, %arg2: i32) -> (i32, i32, i32) {
    %c0_i32 = arith.constant 0 : i32
    %c0_i32_0 = arith.constant 0 : i32
    %c0_i32_1 = arith.constant 0 : i32
    return %arg2, %c0_i32, %c0_i32_0 : i32, i32, i32
  }
  func.func @transform_6(%arg0: i32, %arg1: i32, %arg2: i32) -> (i32, i32, i32) {
    %c0_i32 = arith.constant 0 : i32
    %c0_i32_0 = arith.constant 0 : i32
    %c0_i32_1 = arith.constant 0 : i32
    return %arg2, %c0_i32, %c0_i32_0 : i32, i32, i32
  }
  func.func @transform_7(%arg0: i32, %arg1: i32, %arg2: i32) -> (i32, i32, i32) {
    %c0_i32 = arith.constant 0 : i32
    %c0_i32_0 = arith.constant 0 : i32
    %c0_i32_1 = arith.constant 0 : i32
    return %arg2, %c0_i32, %c0_i32_0 : i32, i32, i32
  }
  func.func @transform_8(%arg0: i32, %arg1: i32, %arg2: i32) -> (i32, i32) {
    %c0_i32 = arith.constant 0 : i32
    %c0_i32_0 = arith.constant 0 : i32
    %c0_i32_1 = arith.constant 0 : i32
    return %c0_i32, %c0_i32_0 : i32, i32
  }
  func.func @transform_9(%arg0: i32, %arg1: i32, %arg2: i32) -> (i32, i32, i32) {
    %c0_i32 = arith.constant 0 : i32
    %c0_i32_0 = arith.constant 0 : i32
    return %arg0, %arg1, %c0_i32 : i32, i32, i32
  }
}

</mosaic_0001>

<llo_original>
// kernel: tpu_custom_call.1
$region0: #{tpu_custom_call.1}
  #allocation0 [shape = 'u32[]', space=smem, size = 0x4, offset = 0x4, fixed_abs, tag = 'smem constant byte address 0x4 - core index']
  #allocation1 [shape = 'u32[144,128]{1,0:T(1,128)}', space=vmem, size = 0x12000, scoped, tag = 'internal scratch']
  #allocation2 [shape = 'f32[64,128]{1,0:T(8,128)}', space=vmem, size = 0x8000, scoped, tag = 'scratch operand']
  %s0 = inlined_call_operand.vmem [shape: f32[2,128,128], index: 0, kind: input, shape index: {}]
  %s1 = inlined_call_operand.vmem [shape: f32[4,128,32], index: 1, kind: input, shape index: {}]
  %s2 = inlined_call_operand.vmem [shape: f32[4,128,32], index: 2, kind: input, shape index: {}]
  %s3 = inlined_call_operand.vmem [shape: f32[4,128,32], index: 3, kind: input, shape index: {}]
  %s4 = inlined_call_operand.vmem [shape: f32[4,32,128], index: 4, kind: input, shape index: {}]
  %s5 = inlined_call_operand.vmem [shape: f32[4,1,32], index: 5, kind: input, shape index: {}]
  %s6 = inlined_call_operand.vmem [shape: f32[4,1,32], index: 6, kind: input, shape index: {}]
  %s7 = inlined_call_operand.vmem [shape: f32[4,1,32], index: 7, kind: input, shape index: {}]
  %s8 = inlined_call_operand.vmem [shape: f32[1,128], index: 8, kind: input, shape index: {}]
  %s9 = inlined_call_operand.hbm [shape: f32[2,128,128], index: 9, kind: output, shape index: {}]
  %s10 = sld [smem:[#allocation0]]
  $region77: #{tpu_custom_call.1} parent=0
    _
  %s12 = ssub.s32 1, %s10
  %s13 = scalar_select 0, %s12, %s10
  $region1: #{tpu_custom_call.1} parent=0
    #allocation3 [shape = 'u8[65536]{0}', space=vmem, size = 0x10000, scoped, tag = 'output window, operand 0']
    #allocation4 [shape = 's32[2]{0}', space=sflag, size = 0x8, scoped, tag = 'scoped memory for tpu_custom_call.1']
    %14 = vsyncpa [#allocation4], 0
    %s15 = scalar_lea.sflag [#allocation4], 1
    %16 = vsyncpa %s15, 0
    loop: start=0, step=1, limit=18
    $region2: #{tpu_custom_call.1} parent=1 // loop_pre_header
      _
    $region3: #{tpu_custom_call.1} parent=1 // loop_header
      %s18 = sphi 0, %s22
      %p19 = scmp.ge.s32.totalorder %s18, 18
      %s25 = sphi 0, %s44
      %s26 = sphi 0, %s40
      %s27 = sphi 0, %s36
      %s28 = sphi 0, %s25
      %s29 = sphi 0, %s26
      %s30 = sphi 0, %s27
      %s31 = sphi 0, %s28
      %s32 = sphi 0, %s29
      %s33 = sphi 0, %s30
      %s47 = sphi 0, %s49
      %s50 = sphi 0, %s47
      %s51 = sphi 0, %s50
      %s67 = sphi 0, %s51
      %s73 = sphi 0, %s75
      %s76 = sphi 0, %s73
      %s77 = sphi 0, %s76
      %s93 = sphi 0, %s77
      %s99 = sphi 0, %s101
      %s102 = sphi 0, %s99
      %s103 = sphi 0, %s102
      %s119 = sphi 0, %s103
      %s125 = sphi 0, %s127
      %s128 = sphi 0, %s125
      %s129 = sphi 0, %s128
      %s145 = sphi 0, %s129
      %s151 = sphi 0, %s153
      %s154 = sphi 0, %s151
      %s155 = sphi 0, %s154
      %s171 = sphi 0, %s155
      %s177 = sphi 0, %s179
      %s180 = sphi 0, %s177
      %s181 = sphi 0, %s180
      %s197 = sphi 0, %s181
      %s203 = sphi 0, %s205
      %s206 = sphi 0, %s203
      %s207 = sphi 0, %s206
      %s223 = sphi 0, %s207
      %s229 = sphi 0, %s231
      %s232 = sphi 0, %s229
      %s233 = sphi 0, %s232
      %s249 = sphi 0, %s233
      %s253 = sphi 0, %s253
      %s255 = sphi 0, %s253
      %s256 = sphi 0, %s255
      %s270 = sphi 0, %s256
      %s278 = sphi 0, %s280
      %s281 = sphi 0, %s278
      %s282 = sphi 0, %s281
      %s298 = sphi 0, %s282
    $region4: #{tpu_custom_call.1} parent=1 // loop_header_branch
      %21 = sbr.rel (%p19) target = $region8
    $region5: #{tpu_custom_call.1} parent=1 // loop_body
      %s23 = ssub.s32 %s18, 1
      %s24 = ssub.s32 %s18, 2
      %s34 = sadd.s32 1, %s27
      %p35 = scmp.ge.s32.totalorder %s34, 4
      %s36 = scalar_select %p35, 0, %s34
      %s37 = sadd.s32 1, %s26
      %s38 = scalar_select %p35, %s37, %s26
      %p39 = scmp.ge.s32.totalorder %s38, 2
      %s40 = scalar_select %p39, 0, %s38
      %s41 = sadd.s32 1, %s25
      %s42 = scalar_select %p39, %s41, %s25
      %p43 = scmp.ge.s32.totalorder %s42, 2
      %s44 = scalar_select %p43, 0, %s42
      %s45 = ssub.s32 %s25, %s44
      %p46 = scmp.eq.s32.totalorder %s45, 0
      %s48 = sadd.s32 %s47, 1
      %s49 = scalar_select %p46, %s47, %s48
      %p52 = pneg %p46
      %p53 = scmp.eq.s32.totalorder %s18, 15
      %p54 = por %p52, %p53
      %p55 = scmp.ne.s32.totalorder %s47, %s50
      %p56 = scmp.eq.s32.totalorder %s18, 0
      %p57 = por %p55, %p56
      %p58 = scmp.ne.s32.totalorder %s47, %s50
      %p59 = scmp.eq.s32.totalorder %s23, 15
      %p60 = por %p58, %p59
      %p61 = scmp.ne.s32.totalorder %s50, %s51
      %p62 = scmp.eq.s32.totalorder %s23, 0
      %p63 = por %p61, %p62
      %p64 = scmp.ne.s32.totalorder %s50, %s51
      %p65 = scmp.eq.s32.totalorder %s24, 15
      %p66 = por %p64, %p65
      %p68 = scmp.ne.s32.totalorder %s51, %s67
      %p69 = scmp.eq.s32.totalorder %s24, 0
      %p70 = por %p68, %p69
      %s71 = ssub.s32 %s27, %s36
      %p72 = scmp.eq.s32.totalorder %s71, 0
      %s74 = sadd.s32 %s73, 1
      %s75 = scalar_select %p72, %s73, %s74
      %p78 = pneg %p72
      %p79 = scmp.eq.s32.totalorder %s18, 15
      %p80 = por %p78, %p79
      %p81 = scmp.ne.s32.totalorder %s73, %s76
      %p82 = scmp.eq.s32.totalorder %s18, 0
      %p83 = por %p81, %p82
      %p84 = scmp.ne.s32.totalorder %s73, %s76
      %p85 = scmp.eq.s32.totalorder %s23, 15
      %p86 = por %p84, %p85
      %p87 = scmp.ne.s32.totalorder %s76, %s77
      %p88 = scmp.eq.s32.totalorder %s23, 0
      %p89 = por %p87, %p88
      %p90 = scmp.ne.s32.totalorder %s76, %s77
      %p91 = scmp.eq.s32.totalorder %s24, 15
      %p92 = por %p90, %p91
      %p94 = scmp.ne.s32.totalorder %s77, %s93
      %p95 = scmp.eq.s32.totalorder %s24, 0
      %p96 = por %p94, %p95
      %s97 = ssub.s32 %s27, %s36
      %p98 = scmp.eq.s32.totalorder %s97, 0
      %s100 = sadd.s32 %s99, 1
      %s101 = scalar_select %p98, %s99, %s100
      %p104 = pneg %p98
      %p105 = scmp.eq.s32.totalorder %s18, 15
      %p106 = por %p104, %p105
      %p107 = scmp.ne.s32.totalorder %s99, %s102
      %p108 = scmp.eq.s32.totalorder %s18, 0
      %p109 = por %p107, %p108
      %p110 = scmp.ne.s32.totalorder %s99, %s102
      %p111 = scmp.eq.s32.totalorder %s23, 15
      %p112 = por %p110, %p111
      %p113 = scmp.ne.s32.totalorder %s102, %s103
      %p114 = scmp.eq.s32.totalorder %s23, 0
      %p115 = por %p113, %p114
      %p116 = scmp.ne.s32.totalorder %s102, %s103
      %p117 = scmp.eq.s32.totalorder %s24, 15
      %p118 = por %p116, %p117
      %p120 = scmp.ne.s32.totalorder %s103, %s119
      %p121 = scmp.eq.s32.totalorder %s24, 0
      %p122 = por %p120, %p121
      %s123 = ssub.s32 %s27, %s36
      %p124 = scmp.eq.s32.totalorder %s123, 0
      %s126 = sadd.s32 %s125, 1
      %s127 = scalar_select %p124, %s125, %s126
      %p130 = pneg %p124
      %p131 = scmp.eq.s32.totalorder %s18, 15
      %p132 = por %p130, %p131
      %p133 = scmp.ne.s32.totalorder %s125, %s128
      %p134 = scmp.eq.s32.totalorder %s18, 0
      %p135 = por %p133, %p134
      %p136 = scmp.ne.s32.totalorder %s125, %s128
      %p137 = scmp.eq.s32.totalorder %s23, 15
      %p138 = por %p136, %p137
      %p139 = scmp.ne.s32.totalorder %s128, %s129
      %p140 = scmp.eq.s32.totalorder %s23, 0
      %p141 = por %p139, %p140
      %p142 = scmp.ne.s32.totalorder %s128, %s129
      %p143 = scmp.eq.s32.totalorder %s24, 15
      %p144 = por %p142, %p143
      %p146 = scmp.ne.s32.totalorder %s129, %s145
      %p147 = scmp.eq.s32.totalorder %s24, 0
      %p148 = por %p146, %p147
      %s149 = ssub.s32 %s27, %s36
      %p150 = scmp.eq.s32.totalorder %s149, 0
      %s152 = sadd.s32 %s151, 1
      %s153 = scalar_select %p150, %s151, %s152
      %p156 = pneg %p150
      %p157 = scmp.eq.s32.totalorder %s18, 15
      %p158 = por %p156, %p157
      %p159 = scmp.ne.s32.totalorder %s151, %s154
      %p160 = scmp.eq.s32.totalorder %s18, 0
      %p161 = por %p159, %p160
      %p162 = scmp.ne.s32.totalorder %s151, %s154
      %p163 = scmp.eq.s32.totalorder %s23, 15
      %p164 = por %p162, %p163
      %p165 = scmp.ne.s32.totalorder %s154, %s155
      %p166 = scmp.eq.s32.totalorder %s23, 0
      %p167 = por %p165, %p166
      %p168 = scmp.ne.s32.totalorder %s154, %s155
      %p169 = scmp.eq.s32.totalorder %s24, 15
      %p170 = por %p168, %p169
      %p172 = scmp.ne.s32.totalorder %s155, %s171
      %p173 = scmp.eq.s32.totalorder %s24, 0
      %p174 = por %p172, %p173
      %s175 = ssub.s32 %s27, %s36
      %p176 = scmp.eq.s32.totalorder %s175, 0
      %s178 = sadd.s32 %s177, 1
      %s179 = scalar_select %p176, %s177, %s178
      %p182 = pneg %p176
      %p183 = scmp.eq.s32.totalorder %s18, 15
      %p184 = por %p182, %p183
      %p185 = scmp.ne.s32.totalorder %s177, %s180
      %p186 = scmp.eq.s32.totalorder %s18, 0
      %p187 = por %p185, %p186
      %p188 = scmp.ne.s32.totalorder %s177, %s180
      %p189 = scmp.eq.s32.totalorder %s23, 15
      %p190 = por %p188, %p189
      %p191 = scmp.ne.s32.totalorder %s180, %s181
      %p192 = scmp.eq.s32.totalorder %s23, 0
      %p193 = por %p191, %p192
      %p194 = scmp.ne.s32.totalorder %s180, %s181
      %p195 = scmp.eq.s32.totalorder %s24, 15
      %p196 = por %p194, %p195
      %p198 = scmp.ne.s32.totalorder %s181, %s197
      %p199 = scmp.eq.s32.totalorder %s24, 0
      %p200 = por %p198, %p199
      %s201 = ssub.s32 %s27, %s36
      %p202 = scmp.eq.s32.totalorder %s201, 0
      %s204 = sadd.s32 %s203, 1
      %s205 = scalar_select %p202, %s203, %s204
      %p208 = pneg %p202
      %p209 = scmp.eq.s32.totalorder %s18, 15
      %p210 = por %p208, %p209
      %p211 = scmp.ne.s32.totalorder %s203, %s206
      %p212 = scmp.eq.s32.totalorder %s18, 0
      %p213 = por %p211, %p212
      %p214 = scmp.ne.s32.totalorder %s203, %s206
      %p215 = scmp.eq.s32.totalorder %s23, 15
      %p216 = por %p214, %p215
      %p217 = scmp.ne.s32.totalorder %s206, %s207
      %p218 = scmp.eq.s32.totalorder %s23, 0
      %p219 = por %p217, %p218
      %p220 = scmp.ne.s32.totalorder %s206, %s207
      %p221 = scmp.eq.s32.totalorder %s24, 15
      %p222 = por %p220, %p221
      %p224 = scmp.ne.s32.totalorder %s207, %s223
      %p225 = scmp.eq.s32.totalorder %s24, 0
      %p226 = por %p224, %p225
      %s227 = ssub.s32 %s27, %s36
      %p228 = scmp.eq.s32.totalorder %s227, 0
      %s230 = sadd.s32 %s229, 1
      %s231 = scalar_select %p228, %s229, %s230
      %p234 = pneg %p228
      %p235 = scmp.eq.s32.totalorder %s18, 15
      %p236 = por %p234, %p235
      %p237 = scmp.ne.s32.totalorder %s229, %s232
      %p238 = scmp.eq.s32.totalorder %s18, 0
      %p239 = por %p237, %p238
      %p240 = scmp.ne.s32.totalorder %s229, %s232
      %p241 = scmp.eq.s32.totalorder %s23, 15
      %p242 = por %p240, %p241
      %p243 = scmp.ne.s32.totalorder %s232, %s233
      %p244 = scmp.eq.s32.totalorder %s23, 0
      %p245 = por %p243, %p244
      %p246 = scmp.ne.s32.totalorder %s232, %s233
      %p247 = scmp.eq.s32.totalorder %s24, 15
      %p248 = por %p246, %p247
      %p250 = scmp.ne.s32.totalorder %s233, %s249
      %p251 = scmp.eq.s32.totalorder %s24, 0
      %p252 = por %p250, %p251
      %s254 = sadd.s32 %s253, 1
      %p257 = scmp.eq.s32.totalorder %s18, 15
      %p258 = scmp.ne.s32.totalorder %s253, %s255
      %p259 = scmp.eq.s32.totalorder %s18, 0
      %p260 = por %p258, %p259
      %p261 = scmp.ne.s32.totalorder %s253, %s255
      %p262 = scmp.eq.s32.totalorder %s23, 15
      %p263 = por %p261, %p262
      %p264 = scmp.ne.s32.totalorder %s255, %s256
      %p265 = scmp.eq.s32.totalorder %s23, 0
      %p266 = por %p264, %p265
      %p267 = scmp.ne.s32.totalorder %s255, %s256
      %p268 = scmp.eq.s32.totalorder %s24, 15
      %p269 = por %p267, %p268
      %p271 = scmp.ne.s32.totalorder %s256, %s270
      %p272 = scmp.eq.s32.totalorder %s24, 0
      %p273 = por %p271, %p272
      %s274 = ssub.s32 %s25, %s44
      %s275 = ssub.s32 %s26, %s40
      %s276 = sor.u32 %s274, %s275
      %p277 = scmp.eq.s32.totalorder %s276, 0
      %s279 = sadd.s32 %s278, 1
      %s280 = scalar_select %p277, %s278, %s279
      %p283 = pneg %p277
      %p284 = scmp.eq.s32.totalorder %s18, 15
      %p285 = por %p283, %p284
      %p286 = scmp.ne.s32.totalorder %s278, %s281
      %p287 = scmp.eq.s32.totalorder %s18, 0
      %p288 = por %p286, %p287
      %p289 = scmp.ne.s32.totalorder %s278, %s281
      %p290 = scmp.eq.s32.totalorder %s23, 15
      %p291 = por %p289, %p290
      %p292 = scmp.ne.s32.totalorder %s281, %s282
      %p293 = scmp.eq.s32.totalorder %s23, 0
      %p294 = por %p292, %p293
      %p295 = scmp.ne.s32.totalorder %s281, %s282
      %p296 = scmp.eq.s32.totalorder %s24, 15
      %p297 = por %p295, %p296
      %p299 = scmp.ne.s32.totalorder %s282, %s298
      %p300 = scmp.eq.s32.totalorder %s24, 0
      %p301 = por %p299, %p300
      %p302 = scmp.le.s32.totalorder 1, %s18
      %p303 = scmp.lt.s32.totalorder %s18, 17
      %p304 = pnand %p302, %p303
      %p305 = pneg %p304
      // Predicated region
      $region9: #{tpu_custom_call.1} parent=5 // pred_check
        _
      $region10: #{tpu_custom_call.1} parent=5 // pred_check_branch
        %307 = sbr.rel (%p304) target = $region12
      $region11: #{tpu_custom_call.1} parent=5 // pred_region
        %s308 = ssub.s32 %s18, 1
        // Predicated region
        $region13: #{tpu_custom_call.1} parent=11 // pred_check
          %p309 = pneg %p266
        $region14: #{tpu_custom_call.1} parent=11 // pred_check_branch
          %311 = sbr.rel (%p309) target = $region16
        $region15: #{tpu_custom_call.1} parent=11 // pred_region
          _
        $region16: #{tpu_custom_call.1} parent=11 // pred_fallthru
          _
      $region12: #{tpu_custom_call.1} parent=5 // pred_fallthru
        _
      %p312 = scmp.lt.s32.totalorder %s18, 16
      // Predicated region
      $region17: #{tpu_custom_call.1} parent=5 // pred_check
        %p313 = pneg %p312
      $region18: #{tpu_custom_call.1} parent=5 // pred_check_branch
        %315 = sbr.rel (%p313) target = $region20
      $region19: #{tpu_custom_call.1} parent=5 // pred_region
        // Predicated region
        $region21: #{tpu_custom_call.1} parent=19 // pred_check
          %p316 = pneg %p57
        $region22: #{tpu_custom_call.1} parent=19 // pred_check_branch
          %318 = sbr.rel (%p316) target = $region24
        $region23: #{tpu_custom_call.1} parent=19 // pred_region
          %p319 = scmp.lt.s32.totalorder %s25, 1
          %s320 = scalar_select %p319, %s25, 1
          %s321 = smul.addr %s320, 16
          %s322 = smul.addr %s321, 8
          %s323 = scalar_lea.vmem %s0, %s322
        $region24: #{tpu_custom_call.1} parent=19 // pred_fallthru
          _
        // Predicated region
        $region25: #{tpu_custom_call.1} parent=19 // pred_check
          %p324 = pneg %p83
        $region26: #{tpu_custom_call.1} parent=19 // pred_check_branch
          %326 = sbr.rel (%p324) target = $region28
        $region27: #{tpu_custom_call.1} parent=19 // pred_region
          %p327 = scmp.lt.s32.totalorder %s27, 3
          %s328 = scalar_select %p327, %s27, 3
          %s329 = smul.addr %s328, 16
          %s330 = smul.addr %s329, 8
          %s331 = scalar_lea.vmem %s1, %s330
        $region28: #{tpu_custom_call.1} parent=19 // pred_fallthru
          _
        // Predicated region
        $region29: #{tpu_custom_call.1} parent=19 // pred_check
          %p332 = pneg %p109
        $region30: #{tpu_custom_call.1} parent=19 // pred_check_branch
          %334 = sbr.rel (%p332) target = $region32
        $region31: #{tpu_custom_call.1} parent=19 // pred_region
          %p335 = scmp.lt.s32.totalorder %s27, 3
          %s336 = scalar_select %p335, %s27, 3
          %s337 = smul.addr %s336, 16
          %s338 = smul.addr %s337, 8
          %s339 = scalar_lea.vmem %s2, %s338
        $region32: #{tpu_custom_call.1} parent=19 // pred_fallthru
          _
        // Predicated region
        $region33: #{tpu_custom_call.1} parent=19 // pred_check
          %p340 = pneg %p135
        $region34: #{tpu_custom_call.1} parent=19 // pred_check_branch
          %342 = sbr.rel (%p340) target = $region36
        $region35: #{tpu_custom_call.1} parent=19 // pred_region
          %p343 = scmp.lt.s32.totalorder %s27, 3
          %s344 = scalar_select %p343, %s27, 3
          %s345 = smul.addr %s344, 16
          %s346 = smul.addr %s345, 8
          %s347 = scalar_lea.vmem %s3, %s346
        $region36: #{tpu_custom_call.1} parent=19 // pred_fallthru
          _
        // Predicated region
        $region37: #{tpu_custom_call.1} parent=19 // pred_check
          %p348 = pneg %p161
        $region38: #{tpu_custom_call.1} parent=19 // pred_check_branch
          %350 = sbr.rel (%p348) target = $region40
        $region39: #{tpu_custom_call.1} parent=19 // pred_region
          %p351 = scmp.lt.s32.totalorder %s27, 3
          %s352 = scalar_select %p351, %s27, 3
          %s353 = smul.addr %s352, 4
          %s354 = smul.addr %s353, 8
          %s355 = scalar_lea.vmem %s4, %s354
        $region40: #{tpu_custom_call.1} parent=19 // pred_fallthru
          _
        // Predicated region
        $region41: #{tpu_custom_call.1} parent=19 // pred_check
          %p356 = pneg %p187
        $region42: #{tpu_custom_call.1} parent=19 // pred_check_branch
          %358 = sbr.rel (%p356) target = $region44
        $region43: #{tpu_custom_call.1} parent=19 // pred_region
          %p359 = scmp.lt.s32.totalorder %s27, 3
          %s360 = scalar_select %p359, %s27, 3
          %s361 = scalar_lea.vmem %s5, %s360
        $region44: #{tpu_custom_call.1} parent=19 // pred_fallthru
          _
        // Predicated region
        $region45: #{tpu_custom_call.1} parent=19 // pred_check
          %p362 = pneg %p213
        $region46: #{tpu_custom_call.1} parent=19 // pred_check_branch
          %364 = sbr.rel (%p362) target = $region48
        $region47: #{tpu_custom_call.1} parent=19 // pred_region
          %p365 = scmp.lt.s32.totalorder %s27, 3
          %s366 = scalar_select %p365, %s27, 3
          %s367 = scalar_lea.vmem %s6, %s366
        $region48: #{tpu_custom_call.1} parent=19 // pred_fallthru
          _
        // Predicated region
        $region49: #{tpu_custom_call.1} parent=19 // pred_check
          %p368 = pneg %p239
        $region50: #{tpu_custom_call.1} parent=19 // pred_check_branch
          %370 = sbr.rel (%p368) target = $region52
        $region51: #{tpu_custom_call.1} parent=19 // pred_region
          %p371 = scmp.lt.s32.totalorder %s27, 3
          %s372 = scalar_select %p371, %s27, 3
          %s373 = scalar_lea.vmem %s7, %s372
        $region52: #{tpu_custom_call.1} parent=19 // pred_fallthru
          _
      $region20: #{tpu_custom_call.1} parent=5 // pred_fallthru
        _
      %p374 = scmp.le.s32.totalorder 1, %s18
      %p375 = scmp.lt.s32.totalorder %s18, 17
      %p376 = pnand %p374, %p375
      %p377 = pneg %p376
      // Predicated region
      $region53: #{tpu_custom_call.1} parent=5 // pred_check
        _
      $region54: #{tpu_custom_call.1} parent=5 // pred_check_branch
        %379 = sbr.rel (%p376) target = $region56
      $region55: #{tpu_custom_call.1} parent=5 // pred_region
        %s380 = ssub.s32 %s18, 1
        %p381 = scmp.lt.s32.totalorder %s28, 1
        %s382 = scalar_select %p381, %s28, 1
        %s383 = smul.addr %s382, 16
        %s384 = smul.addr %s383, 8
        %s385 = scalar_lea.vmem %s0, %s384
        %p386 = pneg %p63
        %p387 = pneg %p60
        %p388 = scmp.lt.s32.totalorder %s30, 3
        %s389 = scalar_select %p388, %s30, 3
        %s390 = smul.addr %s389, 16
        %s391 = smul.addr %s390, 8
        %s392 = scalar_lea.vmem %s1, %s391
        %p393 = pneg %p89
        %p394 = pneg %p86
        %p395 = scmp.lt.s32.totalorder %s30, 3
        %s396 = scalar_select %p395, %s30, 3
        %s397 = smul.addr %s396, 16
        %s398 = smul.addr %s397, 8
        %s399 = scalar_lea.vmem %s2, %s398
        %p400 = pneg %p115
        %p401 = pneg %p112
        %p402 = scmp.lt.s32.totalorder %s30, 3
        %s403 = scalar_select %p402, %s30, 3
        %s404 = smul.addr %s403, 16
        %s405 = smul.addr %s404, 8
        %s406 = scalar_lea.vmem %s3, %s405
        %p407 = pneg %p141
        %p408 = pneg %p138
        %p409 = scmp.lt.s32.totalorder %s30, 3
        %s410 = scalar_select %p409, %s30, 3
        %s411 = smul.addr %s410, 4
        %s412 = smul.addr %s411, 8
        %s413 = scalar_lea.vmem %s4, %s412
        %p414 = pneg %p167
        %p415 = pneg %p164
        %p416 = scmp.lt.s32.totalorder %s30, 3
        %s417 = scalar_select %p416, %s30, 3
        %s418 = scalar_lea.vmem %s5, %s417
        %p419 = pneg %p193
        %p420 = pneg %p190
        %p421 = scmp.lt.s32.totalorder %s30, 3
        %s422 = scalar_select %p421, %s30, 3
        %s423 = scalar_lea.vmem %s6, %s422
        %p424 = pneg %p219
        %p425 = pneg %p216
        %p426 = scmp.lt.s32.totalorder %s30, 3
        %s427 = scalar_select %p426, %s30, 3
        %s428 = scalar_lea.vmem %s7, %s427
        %p429 = pneg %p245
        %p430 = pneg %p242
        %p431 = pneg %p266
        %p432 = pneg %p263
        %p433 = pneg %p294
        %p434 = pneg %p291
        %s435 = sand.u32 %s281, 1
        %s436 = scalar_lea.sflag [#allocation4], %s435
        %s437 = sand.u32 %s281, 1
        %s438 = smul.addr %s437, 64
        %s439 = scalar_lea.vmem [#allocation3], %s438
        %p440 = scmp.lt.s32.totalorder %s28, 1
        %s441 = scalar_select %p440, %s28, 1
        %s442 = smul.addr %s441, 16
        %s443 = smul.addr %s442, 8
        %s444 = scalar_lea.vmem %s0, %s443
        %p445 = scmp.lt.s32.totalorder %s30, 3
        %s446 = scalar_select %p445, %s30, 3
        %s447 = smul.addr %s446, 16
        %s448 = smul.addr %s447, 8
        %s449 = scalar_lea.vmem %s1, %s448
        %p450 = scmp.lt.s32.totalorder %s30, 3
        %s451 = scalar_select %p450, %s30, 3
        %s452 = smul.addr %s451, 16
        %s453 = smul.addr %s452, 8
        %s454 = scalar_lea.vmem %s2, %s453
        %p455 = scmp.lt.s32.totalorder %s30, 3
        %s456 = scalar_select %p455, %s30, 3
        %s457 = smul.addr %s456, 16
        %s458 = smul.addr %s457, 8
        %s459 = scalar_lea.vmem %s3, %s458
        %p460 = scmp.lt.s32.totalorder %s30, 3
        %s461 = scalar_select %p460, %s30, 3
        %s462 = smul.addr %s461, 4
        %s463 = smul.addr %s462, 8
        %s464 = scalar_lea.vmem %s4, %s463
        %p465 = scmp.lt.s32.totalorder %s30, 3
        %s466 = scalar_select %p465, %s30, 3
        %s467 = scalar_lea.vmem %s5, %s466
        %p468 = scmp.lt.s32.totalorder %s30, 3
        %s469 = scalar_select %p468, %s30, 3
        %s470 = scalar_lea.vmem %s6, %s469
        %p471 = scmp.lt.s32.totalorder %s30, 3
        %s472 = scalar_select %p471, %s30, 3
        %s473 = scalar_lea.vmem %s7, %s472
        %s474 = smul.u32 8, %s29
        %p475 = scmp.eq.s32.totalorder %s30, 0
        // Predicated region
        $region57: #{tpu_custom_call.1} parent=55 // pred_check
          %p476 = pneg %p475
        $region58: #{tpu_custom_call.1} parent=55 // pred_check_branch
          %478 = sbr.rel (%p476) target = $region60
        $region59: #{tpu_custom_call.1} parent=55 // pred_region
          %479 = vst [vmem:[#allocation2] sm:$0xff] 0.0
          %480 = vst [vmem:[#allocation2 + $0x8] sm:$0xff] 0.0
          %481 = vst [vmem:[#allocation2 + $0x10] sm:$0xff] 0.0
          %482 = vst [vmem:[#allocation2 + $0x18] sm:$0xff] 0.0
          %483 = vst [vmem:[#allocation2 + $0x20] sm:$0xff] 0.0
          %484 = vst [vmem:[#allocation2 + $0x28] sm:$0xff] 0.0
          %485 = vst [vmem:[#allocation2 + $0x30] sm:$0xff] 0.0
          %486 = vst [vmem:[#allocation2 + $0x38] sm:$0xff] 0.0
        $region60: #{tpu_custom_call.1} parent=55 // pred_fallthru
          _
        %s487 = smul.u32 %s29, 64
        %s488 = scalar_lea.vmem %s444, %s487
        %v489 = vld [vmem:[%s488] sm:$0xff]
        %v490 = vld [vmem:[%s488 + $0x8] sm:$0xff]
        %v491 = vld [vmem:[%s488 + $0x10] sm:$0xff]
        %v492 = vld [vmem:[%s488 + $0x18] sm:$0xff]
        %v493 = vld [vmem:[%s488 + $0x20] sm:$0xff]
        %v494 = vld [vmem:[%s488 + $0x28] sm:$0xff]
        %v495 = vld [vmem:[%s488 + $0x30] sm:$0xff]
        %v496 = vld [vmem:[%s488 + $0x38] sm:$0xff]
        %v497 = vld [vmem:[%s444] sm:$0xff]
        %v498 = vld [vmem:[%s444 + $0x8] sm:$0xff]
        %v499 = vld [vmem:[%s444 + $0x10] sm:$0xff]
        %v500 = vld [vmem:[%s444 + $0x18] sm:$0xff]
        %v501 = vld [vmem:[%s444 + $0x20] sm:$0xff]
        %v502 = vld [vmem:[%s444 + $0x28] sm:$0xff]
        %v503 = vld [vmem:[%s444 + $0x30] sm:$0xff]
        %v504 = vld [vmem:[%s444 + $0x38] sm:$0xff]
        %v505 = vld [vmem:[%s444 + $0x40] sm:$0xff]
        %v506 = vld [vmem:[%s444 + $0x48] sm:$0xff]
        %v507 = vld [vmem:[%s444 + $0x50] sm:$0xff]
        %v508 = vld [vmem:[%s444 + $0x58] sm:$0xff]
        %v509 = vld [vmem:[%s444 + $0x60] sm:$0xff]
        %v510 = vld [vmem:[%s444 + $0x68] sm:$0xff]
        %v511 = vld [vmem:[%s444 + $0x70] sm:$0xff]
        %v512 = vld [vmem:[%s444 + $0x78] sm:$0xff]
        %v513 = vld [vmem:[%s449] sm:$0xff]
        %v514 = vld [vmem:[%s449 + $0x8] sm:$0xff]
        %v515 = vld [vmem:[%s449 + $0x10] sm:$0xff]
        %v516 = vld [vmem:[%s449 + $0x18] sm:$0xff]
        %v517 = vld [vmem:[%s449 + $0x20] sm:$0xff]
        %v518 = vld [vmem:[%s449 + $0x28] sm:$0xff]
        %v519 = vld [vmem:[%s449 + $0x30] sm:$0xff]
        %v520 = vld [vmem:[%s449 + $0x38] sm:$0xff]
        %v521 = vld [vmem:[%s449 + $0x40] sm:$0xff]
        %v522 = vld [vmem:[%s449 + $0x48] sm:$0xff]
        %v523 = vld [vmem:[%s449 + $0x50] sm:$0xff]
        %v524 = vld [vmem:[%s449 + $0x58] sm:$0xff]
        %v525 = vld [vmem:[%s449 + $0x60] sm:$0xff]
        %v526 = vld [vmem:[%s449 + $0x68] sm:$0xff]
        %v527 = vld [vmem:[%s449 + $0x70] sm:$0xff]
        %v528 = vld [vmem:[%s449 + $0x78] sm:$0xff]
        %v529 = vld [vmem:[%s467] sm:$0x1]
        %v531 = vlaneseq
        %v532 = vshrl.u32 %v531, 7
        %v533 = vsub.s32 0, %v532
        %v534 = vrot.slane %v529, %v533
        %536 = vmatprep.subr.mxu0 0.0
        %537 = vmatpush1.msra.mxu0 %v513
        %538 = vmatprep.subr.mxu0 0.0
        %539 = vmatpush1.msra.mxu0 %v514
        %540 = vmatprep.subr.mxu0 0.0
        %541 = vmatpush1.msra.mxu0 %v515
        %542 = vmatprep.subr.mxu0 0.0
        %543 = vmatpush1.msra.mxu0 %v516
        %544 = vmatprep.subr.mxu0 0.0
        %545 = vmatpush1.msra.mxu0 %v517
        %546 = vmatprep.subr.mxu0 0.0
        %547 = vmatpush1.msra.mxu0 %v518
        %548 = vmatprep.subr.mxu0 0.0
        %549 = vmatpush1.msra.mxu0 %v519
        %550 = vmatprep.subr.mxu0 0.0
        %551 = vmatpush1.msra.mxu0 %v520
        %552 = vmatprep.subr.mxu0 0.0
        %553 = vmatpush1.msra.mxu0 %v521
        %554 = vmatprep.subr.mxu0 0.0
        %555 = vmatpush1.msra.mxu0 %v522
        %556 = vmatprep.subr.mxu0 0.0
        %557 = vmatpush1.msra.mxu0 %v523
        %558 = vmatprep.subr.mxu0 0.0
        %559 = vmatpush1.msra.mxu0 %v524
        %560 = vmatprep.subr.mxu0 0.0
        %561 = vmatpush1.msra.mxu0 %v525
        %562 = vmatprep.subr.mxu0 0.0
        %563 = vmatpush1.msra.mxu0 %v526
        %564 = vmatprep.subr.mxu0 0.0
        %565 = vmatpush1.msra.mxu0 %v527
        %566 = vmatprep.subr.mxu0 0.0
        %567 = vmatpush1.msra.mxu0 %v528
        %568 = vmatprep.subr.mxu0 0.0
        %569 = vmatpush1.msra.mxu0 0.0
        %570 = vmatprep.subr.mxu0 0.0
        %571 = vmatpush1.msra.mxu0 0.0
        %572 = vmatprep.subr.mxu0 0.0
        %573 = vmatpush1.msra.mxu0 0.0
        %574 = vmatprep.subr.mxu0 0.0
        %575 = vmatpush1.msra.mxu0 0.0
        %576 = vmatprep.subr.mxu0 0.0
        %577 = vmatpush1.msra.mxu0 0.0
        %578 = vmatprep.subr.mxu0 0.0
        %579 = vmatpush1.msra.mxu0 0.0
        %580 = vmatprep.subr.mxu0 0.0
        %581 = vmatpush1.msra.mxu0 0.0
        %582 = vmatprep.subr.mxu0 0.0
        %583 = vmatpush1.msra.mxu0 0.0
        %584 = vmatprep.subr.mxu0 0.0
        %585 = vmatpush1.msra.mxu0 0.0
        %586 = vmatprep.subr.mxu0 0.0
        %587 = vmatpush1.msra.mxu0 0.0
        %588 = vmatprep.subr.mxu0 0.0
        %589 = vmatpush1.msra.mxu0 0.0
        %590 = vmatprep.subr.mxu0 0.0
        %591 = vmatpush1.msra.mxu0 0.0
        %592 = vmatprep.subr.mxu0 0.0
        %593 = vmatpush1.msra.mxu0 0.0
        %594 = vmatprep.subr.mxu0 0.0
        %595 = vmatpush1.msra.mxu0 0.0
        %596 = vmatprep.subr.mxu0 0.0
        %597 = vmatpush1.msra.mxu0 0.0
        %598 = vmatprep.subr.mxu0 0.0
        %599 = vmatpush1.msra.mxu0 0.0
        %600 = vmatprep.mubr.f32.mxu0 0.0
        %601 = vmatmul.mubr.f32.gmra.mrb[0].mxu0 %v489
        %v602 = vpop.f32.mrb[0].mxu0
        %v603 = vadd.f32 %v534, %v602
        %v604 = vpop.f32.mrb[0].mxu0
        %605 = vmatprep.mubr.f32.mxu0 0.0
        %606 = vmatmul.mubr.f32.gmra.mrb[0].mxu0 %v490
        %v607 = vpop.f32.mrb[0].mxu0
        %v608 = vadd.f32 %v534, %v607
        %v609 = vpop.f32.mrb[0].mxu0
        %610 = vmatprep.mubr.f32.mxu0 0.0
        %611 = vmatmul.mubr.f32.gmra.mrb[0].mxu0 %v491
        %v612 = vpop.f32.mrb[0].mxu0
        %v613 = vadd.f32 %v534, %v612
        %v614 = vpop.f32.mrb[0].mxu0
        %615 = vmatprep.mubr.f32.mxu0 0.0
        %616 = vmatmul.mubr.f32.gmra.mrb[0].mxu0 %v492
        %v617 = vpop.f32.mrb[0].mxu0
        %v618 = vadd.f32 %v534, %v617
        %v619 = vpop.f32.mrb[0].mxu0
        %620 = vmatprep.mubr.f32.mxu0 0.0
        %621 = vmatmul.mubr.f32.gmra.mrb[0].mxu0 %v493
        %v622 = vpop.f32.mrb[0].mxu0
        %v623 = vadd.f32 %v534, %v622
        %v624 = vpop.f32.mrb[0].mxu0
        %625 = vmatprep.mubr.f32.mxu0 0.0
        %626 = vmatmul.mubr.f32.gmra.mrb[0].mxu0 %v494
        %v627 = vpop.f32.mrb[0].mxu0
        %v628 = vadd.f32 %v534, %v627
        %v629 = vpop.f32.mrb[0].mxu0
        %630 = vmatprep.mubr.f32.mxu0 0.0
        %631 = vmatmul.mubr.f32.gmra.mrb[0].mxu0 %v495
        %v632 = vpop.f32.mrb[0].mxu0
        %v633 = vadd.f32 %v534, %v632
        %v634 = vpop.f32.mrb[0].mxu0
        %635 = vmatprep.mubr.f32.mxu0 0.0
        %636 = vmatmul.mubr.f32.gmra.mrb[0].mxu0 %v496
        %v637 = vpop.f32.mrb[0].mxu0
        %v638 = vadd.f32 %v534, %v637
        %v639 = vpop.f32.mrb[0].mxu0
        %640 = vdwg.mxu0
        %v641 = vld [vmem:[%s454] sm:$0xff]
        %v642 = vld [vmem:[%s454 + $0x8] sm:$0xff]
        %v643 = vld [vmem:[%s454 + $0x10] sm:$0xff]
        %v644 = vld [vmem:[%s454 + $0x18] sm:$0xff]
        %v645 = vld [vmem:[%s454 + $0x20] sm:$0xff]
        %v646 = vld [vmem:[%s454 + $0x28] sm:$0xff]
        %v647 = vld [vmem:[%s454 + $0x30] sm:$0xff]
        %v648 = vld [vmem:[%s454 + $0x38] sm:$0xff]
        %v649 = vld [vmem:[%s454 + $0x40] sm:$0xff]
        %v650 = vld [vmem:[%s454 + $0x48] sm:$0xff]
        %v651 = vld [vmem:[%s454 + $0x50] sm:$0xff]
        %v652 = vld [vmem:[%s454 + $0x58] sm:$0xff]
        %v653 = vld [vmem:[%s454 + $0x60] sm:$0xff]
        %v654 = vld [vmem:[%s454 + $0x68] sm:$0xff]
        %v655 = vld [vmem:[%s454 + $0x70] sm:$0xff]
        %v656 = vld [vmem:[%s454 + $0x78] sm:$0xff]
        %v657 = vld [vmem:[%s470] sm:$0x1]
        %v659 = vlaneseq
        %v660 = vshrl.u32 %v659, 7
        %v661 = vsub.s32 0, %v660
        %v662 = vrot.slane %v657, %v661
        %664 = vmatprep.subr.mxu0 0.0
        %665 = vmatpush1.msra.mxu0 %v641
        %666 = vmatprep.subr.mxu0 0.0
        %667 = vmatpush1.msra.mxu0 %v642
        %668 = vmatprep.subr.mxu0 0.0
        %669 = vmatpush1.msra.mxu0 %v643
        %670 = vmatprep.subr.mxu0 0.0
        %671 = vmatpush1.msra.mxu0 %v644
        %672 = vmatprep.subr.mxu0 0.0
        %673 = vmatpush1.msra.mxu0 %v645
        %674 = vmatprep.subr.mxu0 0.0
        %675 = vmatpush1.msra.mxu0 %v646
        %676 = vmatprep.subr.mxu0 0.0
        %677 = vmatpush1.msra.mxu0 %v647
        %678 = vmatprep.subr.mxu0 0.0
        %679 = vmatpush1.msra.mxu0 %v648
        %680 = vmatprep.subr.mxu0 0.0
        %681 = vmatpush1.msra.mxu0 %v649
        %682 = vmatprep.subr.mxu0 0.0
        %683 = vmatpush1.msra.mxu0 %v650
        %684 = vmatprep.subr.mxu0 0.0
        %685 = vmatpush1.msra.mxu0 %v651
        %686 = vmatprep.subr.mxu0 0.0
        %687 = vmatpush1.msra.mxu0 %v652
        %688 = vmatprep.subr.mxu0 0.0
        %689 = vmatpush1.msra.mxu0 %v653
        %690 = vmatprep.subr.mxu0 0.0
        %691 = vmatpush1.msra.mxu0 %v654
        %692 = vmatprep.subr.mxu0 0.0
        %693 = vmatpush1.msra.mxu0 %v655
        %694 = vmatprep.subr.mxu0 0.0
        %695 = vmatpush1.msra.mxu0 %v656
        %696 = vmatprep.subr.mxu0 0.0
        %697 = vmatpush1.msra.mxu0 0.0
        %698 = vmatprep.subr.mxu0 0.0
        %699 = vmatpush1.msra.mxu0 0.0
        %700 = vmatprep.subr.mxu0 0.0
        %701 = vmatpush1.msra.mxu0 0.0
        %702 = vmatprep.subr.mxu0 0.0
        %703 = vmatpush1.msra.mxu0 0.0
        %704 = vmatprep.subr.mxu0 0.0
        %705 = vmatpush1.msra.mxu0 0.0
        %706 = vmatprep.subr.mxu0 0.0
        %707 = vmatpush1.msra.mxu0 0.0
        %708 = vmatprep.subr.mxu0 0.0
        %709 = vmatpush1.msra.mxu0 0.0
        %710 = vmatprep.subr.mxu0 0.0
        %711 = vmatpush1.msra.mxu0 0.0
        %712 = vmatprep.subr.mxu0 0.0
        %713 = vmatpush1.msra.mxu0 0.0
        %714 = vmatprep.subr.mxu0 0.0
        %715 = vmatpush1.msra.mxu0 0.0
        %716 = vmatprep.subr.mxu0 0.0
        %717 = vmatpush1.msra.mxu0 0.0
        %718 = vmatprep.subr.mxu0 0.0
        %719 = vmatpush1.msra.mxu0 0.0
        %720 = vmatprep.subr.mxu0 0.0
        %721 = vmatpush1.msra.mxu0 0.0
        %722 = vmatprep.subr.mxu0 0.0
        %723 = vmatpush1.msra.mxu0 0.0
        %724 = vmatprep.subr.mxu0 0.0
        %725 = vmatpush1.msra.mxu0 0.0
        %726 = vmatprep.subr.mxu0 0.0
        %727 = vmatpush1.msra.mxu0 0.0
        %728 = vmatprep.mubr.f32.mxu0 0.0
        %729 = vmatmul.mubr.f32.gmra.mrb[0].mxu0 %v497
        %v730 = vpop.f32.mrb[0].mxu0
        %v731 = vadd.f32 %v662, %v730
        %v732 = vpop.f32.mrb[0].mxu0
        %733 = vmatprep.mubr.f32.mxu0 0.0
        %734 = vmatmul.mubr.f32.gmra.mrb[0].mxu0 %v498
        %v735 = vpop.f32.mrb[0].mxu0
        %v736 = vadd.f32 %v662, %v735
        %v737 = vpop.f32.mrb[0].mxu0
        %738 = vmatprep.mubr.f32.mxu0 0.0
        %739 = vmatmul.mubr.f32.gmra.mrb[0].mxu0 %v499
        %v740 = vpop.f32.mrb[0].mxu0
        %v741 = vadd.f32 %v662, %v740
        %v742 = vpop.f32.mrb[0].mxu0
        %743 = vmatprep.mubr.f32.mxu0 0.0
        %744 = vmatmul.mubr.f32.gmra.mrb[0].mxu0 %v500
        %v745 = vpop.f32.mrb[0].mxu0
        %v746 = vadd.f32 %v662, %v745
        %v747 = vpop.f32.mrb[0].mxu0
        %748 = vmatprep.mubr.f32.mxu0 0.0
        %749 = vmatmul.mubr.f32.gmra.mrb[0].mxu0 %v501
        %v750 = vpop.f32.mrb[0].mxu0
        %v751 = vadd.f32 %v662, %v750
        %v752 = vpop.f32.mrb[0].mxu0
        %753 = vmatprep.mubr.f32.mxu0 0.0
        %754 = vmatmul.mubr.f32.gmra.mrb[0].mxu0 %v502
        %v755 = vpop.f32.mrb[0].mxu0
        %v756 = vadd.f32 %v662, %v755
        %v757 = vpop.f32.mrb[0].mxu0
        %758 = vmatprep.mubr.f32.mxu0 0.0
        %759 = vmatmul.mubr.f32.gmra.mrb[0].mxu0 %v503
        %v760 = vpop.f32.mrb[0].mxu0
        %v761 = vadd.f32 %v662, %v760
        %v762 = vpop.f32.mrb[0].mxu0
        %763 = vmatprep.mubr.f32.mxu0 0.0
        %764 = vmatmul.mubr.f32.gmra.mrb[0].mxu0 %v504
        %v765 = vpop.f32.mrb[0].mxu0
        %v766 = vadd.f32 %v662, %v765
        %v767 = vpop.f32.mrb[0].mxu0
        %768 = vmatprep.mubr.f32.mxu0 0.0
        %769 = vmatmul.mubr.f32.gmra.mrb[0].mxu0 %v505
        %v770 = vpop.f32.mrb[0].mxu0
        %v771 = vadd.f32 %v662, %v770
        %v772 = vpop.f32.mrb[0].mxu0
        %773 = vmatprep.mubr.f32.mxu0 0.0
        %774 = vmatmul.mubr.f32.gmra.mrb[0].mxu0 %v506
        %v775 = vpop.f32.mrb[0].mxu0
        %v776 = vadd.f32 %v662, %v775
        %v777 = vpop.f32.mrb[0].mxu0
        %778 = vmatprep.mubr.f32.mxu0 0.0
        %779 = vmatmul.mubr.f32.gmra.mrb[0].mxu0 %v507
        %v780 = vpop.f32.mrb[0].mxu0
        %v781 = vadd.f32 %v662, %v780
        %v782 = vpop.f32.mrb[0].mxu0
        %783 = vmatprep.mubr.f32.mxu0 0.0
        %784 = vmatmul.mubr.f32.gmra.mrb[0].mxu0 %v508
        %v785 = vpop.f32.mrb[0].mxu0
        %v786 = vadd.f32 %v662, %v785
        %v787 = vpop.f32.mrb[0].mxu0
        %788 = vmatprep.mubr.f32.mxu0 0.0
        %789 = vmatmul.mubr.f32.gmra.mrb[0].mxu0 %v509
        %v790 = vpop.f32.mrb[0].mxu0
        %v791 = vadd.f32 %v662, %v790
        %v792 = vpop.f32.mrb[0].mxu0
        %793 = vmatprep.mubr.f32.mxu0 0.0
        %794 = vmatmul.mubr.f32.gmra.mrb[0].mxu0 %v510
        %v795 = vpop.f32.mrb[0].mxu0
        %v796 = vadd.f32 %v662, %v795
        %v797 = vpop.f32.mrb[0].mxu0
        %798 = vmatprep.mubr.f32.mxu0 0.0
        %799 = vmatmul.mubr.f32.gmra.mrb[0].mxu0 %v511
        %v800 = vpop.f32.mrb[0].mxu0
        %v801 = vadd.f32 %v662, %v800
        %v802 = vpop.f32.mrb[0].mxu0
        %803 = vmatprep.mubr.f32.mxu0 0.0
        %804 = vmatmul.mubr.f32.gmra.mrb[0].mxu0 %v512
        %v805 = vpop.f32.mrb[0].mxu0
        %v806 = vadd.f32 %v662, %v805
        %v807 = vpop.f32.mrb[0].mxu0
        %808 = vdwg.mxu0
        %v809 = vld [vmem:[%s459] sm:$0xff]
        %v810 = vld [vmem:[%s459 + $0x8] sm:$0xff]
        %v811 = vld [vmem:[%s459 + $0x10] sm:$0xff]
        %v812 = vld [vmem:[%s459 + $0x18] sm:$0xff]
        %v813 = vld [vmem:[%s459 + $0x20] sm:$0xff]
        %v814 = vld [vmem:[%s459 + $0x28] sm:$0xff]
        %v815 = vld [vmem:[%s459 + $0x30] sm:$0xff]
        %v816 = vld [vmem:[%s459 + $0x38] sm:$0xff]
        %v817 = vld [vmem:[%s459 + $0x40] sm:$0xff]
        %v818 = vld [vmem:[%s459 + $0x48] sm:$0xff]
        %v819 = vld [vmem:[%s459 + $0x50] sm:$0xff]
        %v820 = vld [vmem:[%s459 + $0x58] sm:$0xff]
        %v821 = vld [vmem:[%s459 + $0x60] sm:$0xff]
        %v822 = vld [vmem:[%s459 + $0x68] sm:$0xff]
        %v823 = vld [vmem:[%s459 + $0x70] sm:$0xff]
        %v824 = vld [vmem:[%s459 + $0x78] sm:$0xff]
        %v825 = vld [vmem:[%s473] sm:$0x1]
        %v827 = vlaneseq
        %v828 = vshrl.u32 %v827, 7
        %v829 = vsub.s32 0, %v828
        %v830 = vrot.slane %v825, %v829
        %832 = vmatprep.subr.mxu0 0.0
        %833 = vmatpush1.msra.mxu0 %v809
        %834 = vmatprep.subr.mxu0 0.0
        %835 = vmatpush1.msra.mxu0 %v810
        %836 = vmatprep.subr.mxu0 0.0
        %837 = vmatpush1.msra.mxu0 %v811
        %838 = vmatprep.subr.mxu0 0.0
        %839 = vmatpush1.msra.mxu0 %v812
        %840 = vmatprep.subr.mxu0 0.0
        %841 = vmatpush1.msra.mxu0 %v813
        %842 = vmatprep.subr.mxu0 0.0
        %843 = vmatpush1.msra.mxu0 %v814
        %844 = vmatprep.subr.mxu0 0.0
        %845 = vmatpush1.msra.mxu0 %v815
        %846 = vmatprep.subr.mxu0 0.0
        %847 = vmatpush1.msra.mxu0 %v816
        %848 = vmatprep.subr.mxu0 0.0
        %849 = vmatpush1.msra.mxu0 %v817
        %850 = vmatprep.subr.mxu0 0.0
        %851 = vmatpush1.msra.mxu0 %v818
        %852 = vmatprep.subr.mxu0 0.0
        %853 = vmatpush1.msra.mxu0 %v819
        %854 = vmatprep.subr.mxu0 0.0
        %855 = vmatpush1.msra.mxu0 %v820
        %856 = vmatprep.subr.mxu0 0.0
        %857 = vmatpush1.msra.mxu0 %v821
        %858 = vmatprep.subr.mxu0 0.0
        %859 = vmatpush1.msra.mxu0 %v822
        %860 = vmatprep.subr.mxu0 0.0
        %861 = vmatpush1.msra.mxu0 %v823
        %862 = vmatprep.subr.mxu0 0.0
        %863 = vmatpush1.msra.mxu0 %v824
        %864 = vmatprep.subr.mxu0 0.0
        %865 = vmatpush1.msra.mxu0 0.0
        %866 = vmatprep.subr.mxu0 0.0
        %867 = vmatpush1.msra.mxu0 0.0
        %868 = vmatprep.subr.mxu0 0.0
        %869 = vmatpush1.msra.mxu0 0.0
        %870 = vmatprep.subr.mxu0 0.0
        %871 = vmatpush1.msra.mxu0 0.0
        %872 = vmatprep.subr.mxu0 0.0
        %873 = vmatpush1.msra.mxu0 0.0
        %874 = vmatprep.subr.mxu0 0.0
        %875 = vmatpush1.msra.mxu0 0.0
        %876 = vmatprep.subr.mxu0 0.0
        %877 = vmatpush1.msra.mxu0 0.0
        %878 = vmatprep.subr.mxu0 0.0
        %879 = vmatpush1.msra.mxu0 0.0
        %880 = vmatprep.subr.mxu0 0.0
        %881 = vmatpush1.msra.mxu0 0.0
        %882 = vmatprep.subr.mxu0 0.0
        %883 = vmatpush1.msra.mxu0 0.0
        %884 = vmatprep.subr.mxu0 0.0
        %885 = vmatpush1.msra.mxu0 0.0
        %886 = vmatprep.subr.mxu0 0.0
        %887 = vmatpush1.msra.mxu0 0.0
        %888 = vmatprep.subr.mxu0 0.0
        %889 = vmatpush1.msra.mxu0 0.0
        %890 = vmatprep.subr.mxu0 0.0
        %891 = vmatpush1.msra.mxu0 0.0
        %892 = vmatprep.subr.mxu0 0.0
        %893 = vmatpush1.msra.mxu0 0.0
        %894 = vmatprep.subr.mxu0 0.0
        %895 = vmatpush1.msra.mxu0 0.0
        %896 = vmatprep.mubr.f32.mxu0 0.0
        %897 = vmatmul.mubr.f32.gmra.mrb[0].mxu0 %v497
        %v898 = vpop.f32.mrb[0].mxu0
        %v899 = vadd.f32 %v830, %v898
        %v900 = vpop.f32.mrb[0].mxu0
        %901 = vmatprep.mubr.f32.mxu0 0.0
        %902 = vmatmul.mubr.f32.gmra.mrb[0].mxu0 %v498
        %v903 = vpop.f32.mrb[0].mxu0
        %v904 = vadd.f32 %v830, %v903
        %v905 = vpop.f32.mrb[0].mxu0
        %906 = vmatprep.mubr.f32.mxu0 0.0
        %907 = vmatmul.mubr.f32.gmra.mrb[0].mxu0 %v499
        %v908 = vpop.f32.mrb[0].mxu0
        %v909 = vadd.f32 %v830, %v908
        %v910 = vpop.f32.mrb[0].mxu0
        %911 = vmatprep.mubr.f32.mxu0 0.0
        %912 = vmatmul.mubr.f32.gmra.mrb[0].mxu0 %v500
        %v913 = vpop.f32.mrb[0].mxu0
        %v914 = vadd.f32 %v830, %v913
        %v915 = vpop.f32.mrb[0].mxu0
        %916 = vmatprep.mubr.f32.mxu0 0.0
        %917 = vmatmul.mubr.f32.gmra.mrb[0].mxu0 %v501
        %v918 = vpop.f32.mrb[0].mxu0
        %v919 = vadd.f32 %v830, %v918
        %v920 = vpop.f32.mrb[0].mxu0
        %921 = vmatprep.mubr.f32.mxu0 0.0
        %922 = vmatmul.mubr.f32.gmra.mrb[0].mxu0 %v502
        %v923 = vpop.f32.mrb[0].mxu0
        %v924 = vadd.f32 %v830, %v923
        %v925 = vpop.f32.mrb[0].mxu0
        %926 = vmatprep.mubr.f32.mxu0 0.0
        %927 = vmatmul.mubr.f32.gmra.mrb[0].mxu0 %v503
        %v928 = vpop.f32.mrb[0].mxu0
        %v929 = vadd.f32 %v830, %v928
        %v930 = vpop.f32.mrb[0].mxu0
        %931 = vmatprep.mubr.f32.mxu0 0.0
        %932 = vmatmul.mubr.f32.gmra.mrb[0].mxu0 %v504
        %v933 = vpop.f32.mrb[0].mxu0
        %v934 = vadd.f32 %v830, %v933
        %v935 = vpop.f32.mrb[0].mxu0
        %936 = vmatprep.mubr.f32.mxu0 0.0
        %937 = vmatmul.mubr.f32.gmra.mrb[0].mxu0 %v505
        %v938 = vpop.f32.mrb[0].mxu0
        %v939 = vadd.f32 %v830, %v938
        %v940 = vpop.f32.mrb[0].mxu0
        %941 = vmatprep.mubr.f32.mxu0 0.0
        %942 = vmatmul.mubr.f32.gmra.mrb[0].mxu0 %v506
        %v943 = vpop.f32.mrb[0].mxu0
        %v944 = vadd.f32 %v830, %v943
        %v945 = vpop.f32.mrb[0].mxu0
        %946 = vmatprep.mubr.f32.mxu0 0.0
        %947 = vmatmul.mubr.f32.gmra.mrb[0].mxu0 %v507
        %v948 = vpop.f32.mrb[0].mxu0
        %v949 = vadd.f32 %v830, %v948
        %v950 = vpop.f32.mrb[0].mxu0
        %951 = vmatprep.mubr.f32.mxu0 0.0
        %952 = vmatmul.mubr.f32.gmra.mrb[0].mxu0 %v508
        %v953 = vpop.f32.mrb[0].mxu0
        %v954 = vadd.f32 %v830, %v953
        %v955 = vpop.f32.mrb[0].mxu0
        %956 = vmatprep.mubr.f32.mxu0 0.0
        %957 = vmatmul.mubr.f32.gmra.mrb[0].mxu0 %v509
        %v958 = vpop.f32.mrb[0].mxu0
        %v959 = vadd.f32 %v830, %v958
        %v960 = vpop.f32.mrb[0].mxu0
        %961 = vmatprep.mubr.f32.mxu0 0.0
        %962 = vmatmul.mubr.f32.gmra.mrb[0].mxu0 %v510
        %v963 = vpop.f32.mrb[0].mxu0
        %v964 = vadd.f32 %v830, %v963
        %v965 = vpop.f32.mrb[0].mxu0
        %966 = vmatprep.mubr.f32.mxu0 0.0
        %967 = vmatmul.mubr.f32.gmra.mrb[0].mxu0 %v511
        %v968 = vpop.f32.mrb[0].mxu0
        %v969 = vadd.f32 %v830, %v968
        %v970 = vpop.f32.mrb[0].mxu0
        %971 = vmatprep.mubr.f32.mxu0 0.0
        %972 = vmatmul.mubr.f32.gmra.mrb[0].mxu0 %v512
        %v973 = vpop.f32.mrb[0].mxu0
        %v974 = vadd.f32 %v830, %v973
        %v975 = vpop.f32.mrb[0].mxu0
        %976 = vdwg.mxu0
        %v977 = vmul.f32 %v603, 0.17677669
        %v978 = vmul.f32 %v608, 0.17677669
        %v979 = vmul.f32 %v613, 0.17677669
        %v980 = vmul.f32 %v618, 0.17677669
        %v981 = vmul.f32 %v623, 0.17677669
        %v982 = vmul.f32 %v628, 0.17677669
        %v983 = vmul.f32 %v633, 0.17677669
        %v984 = vmul.f32 %v638, 0.17677669
        %vm985 = vcmask 261120
        %v987 = vsel %vm985, %v977, 0
        %v990 = vsel %vm985, %v978, 0
        %v993 = vsel %vm985, %v979, 0
        %v996 = vsel %vm985, %v980, 0
        %v999 = vsel %vm985, %v981, 0
        %v1002 = vsel %vm985, %v982, 0
        %v1005 = vsel %vm985, %v983, 0
        %v1008 = vsel %vm985, %v984, 0
        %v1011 = vsel %vm985, %v731, 0
        %v1014 = vsel %vm985, %v736, 0
        %v1017 = vsel %vm985, %v741, 0
        %v1020 = vsel %vm985, %v746, 0
        %v1023 = vsel %vm985, %v751, 0
        %v1026 = vsel %vm985, %v756, 0
        %v1029 = vsel %vm985, %v761, 0
        %v1032 = vsel %vm985, %v766, 0
        %v1035 = vsel %vm985, %v771, 0
        %v1038 = vsel %vm985, %v776, 0
        %v1041 = vsel %vm985, %v781, 0
        %v1044 = vsel %vm985, %v786, 0
        %v1047 = vsel %vm985, %v791, 0
        %v1050 = vsel %vm985, %v796, 0
        %v1053 = vsel %vm985, %v801, 0
        %v1056 = vsel %vm985, %v806, 0
        %1058 = vmatprep.subr.mxu0 0.0
        %1059 = vmatpush1.xpose.msra.mxu0 %v1011
        %1060 = vmatprep.subr.mxu0 0.0
        %1061 = vmatpush1.xpose.msra.mxu0 %v1014
        %1062 = vmatprep.subr.mxu0 0.0
        %1063 = vmatpush1.xpose.msra.mxu0 %v1017
        %1064 = vmatprep.subr.mxu0 0.0
        %1065 = vmatpush1.xpose.msra.mxu0 %v1020
        %1066 = vmatprep.subr.mxu0 0.0
        %1067 = vmatpush1.xpose.msra.mxu0 %v1023
        %1068 = vmatprep.subr.mxu0 0.0
        %1069 = vmatpush1.xpose.msra.mxu0 %v1026
        %1070 = vmatprep.subr.mxu0 0.0
        %1071 = vmatpush1.xpose.msra.mxu0 %v1029
        %1072 = vmatprep.subr.mxu0 0.0
        %1073 = vmatpush1.xpose.msra.mxu0 %v1032
        %1074 = vmatprep.subr.mxu0 0.0
        %1075 = vmatpush1.xpose.msra.mxu0 %v1035
        %1076 = vmatprep.subr.mxu0 0.0
        %1077 = vmatpush1.xpose.msra.mxu0 %v1038
        %1078 = vmatprep.subr.mxu0 0.0
        %1079 = vmatpush1.xpose.msra.mxu0 %v1041
        %1080 = vmatprep.subr.mxu0 0.0
        %1081 = vmatpush1.xpose.msra.mxu0 %v1044
        %1082 = vmatprep.subr.mxu0 0.0
        %1083 = vmatpush1.xpose.msra.mxu0 %v1047
        %1084 = vmatprep.subr.mxu0 0.0
        %1085 = vmatpush1.xpose.msra.mxu0 %v1050
        %1086 = vmatprep.subr.mxu0 0.0
        %1087 = vmatpush1.xpose.msra.mxu0 %v1053
        %1088 = vmatprep.subr.mxu0 0.0
        %1089 = vmatpush1.xpose.msra.mxu0 %v1056
        %1090 = vmatprep.subr.mxu0 0.0
        %1091 = vmatpush1.xpose.msra.mxu0 0.0
        %1092 = vmatprep.subr.mxu0 0.0
        %1093 = vmatpush1.xpose.msra.mxu0 0.0
        %1094 = vmatprep.subr.mxu0 0.0
        %1095 = vmatpush1.xpose.msra.mxu0 0.0
        %1096 = vmatprep.subr.mxu0 0.0
        %1097 = vmatpush1.xpose.msra.mxu0 0.0
        %1098 = vmatprep.subr.mxu0 0.0
        %1099 = vmatpush1.xpose.msra.mxu0 0.0
        %1100 = vmatprep.subr.mxu0 0.0
        %1101 = vmatpush1.xpose.msra.mxu0 0.0
        %1102 = vmatprep.subr.mxu0 0.0
        %1103 = vmatpush1.xpose.msra.mxu0 0.0
        %1104 = vmatprep.subr.mxu0 0.0
        %1105 = vmatpush1.xpose.msra.mxu0 0.0
        %1106 = vmatprep.subr.mxu0 0.0
        %1107 = vmatpush1.xpose.msra.mxu0 0.0
        %1108 = vmatprep.subr.mxu0 0.0
        %1109 = vmatpush1.xpose.msra.mxu0 0.0
        %1110 = vmatprep.subr.mxu0 0.0
        %1111 = vmatpush1.xpose.msra.mxu0 0.0
        %1112 = vmatprep.subr.mxu0 0.0
        %1113 = vmatpush1.xpose.msra.mxu0 0.0
        %1114 = vmatprep.subr.mxu0 0.0
        %1115 = vmatpush1.xpose.msra.mxu0 0.0
        %1116 = vmatprep.subr.mxu0 0.0
        %1117 = vmatpush1.xpose.msra.mxu0 0.0
        %1118 = vmatprep.subr.mxu0 0.0
        %1119 = vmatpush1.xpose.msra.mxu0 0.0
        %1120 = vmatprep.subr.mxu0 0.0
        %1121 = vmatpush1.xpose.msra.mxu0 0.0
        %1122 = vmatprep.mubr.f32.mxu0 0.0
        %1123 = vmatmul.mubr.f32.gmra.mrb[0].mxu0 %v987
        %v1124 = vpop.f32.mrb[0].mxu0
        %v1125 = vadd.f32 0.0, %v1124
        %v1126 = vpop.f32.mrb[0].mxu0
        %1127 = vmatprep.mubr.f32.mxu0 0.0
        %1128 = vmatmul.mubr.f32.gmra.mrb[0].mxu0 %v990
        %v1129 = vpop.f32.mrb[0].mxu0
        %v1130 = vadd.f32 0.0, %v1129
        %v1131 = vpop.f32.mrb[0].mxu0
        %1132 = vmatprep.mubr.f32.mxu0 0.0
        %1133 = vmatmul.mubr.f32.gmra.mrb[0].mxu0 %v993
        %v1134 = vpop.f32.mrb[0].mxu0
        %v1135 = vadd.f32 0.0, %v1134
        %v1136 = vpop.f32.mrb[0].mxu0
        %1137 = vmatprep.mubr.f32.mxu0 0.0
        %1138 = vmatmul.mubr.f32.gmra.mrb[0].mxu0 %v996
        %v1139 = vpop.f32.mrb[0].mxu0
        %v1140 = vadd.f32 0.0, %v1139
        %v1141 = vpop.f32.mrb[0].mxu0
        %1142 = vmatprep.mubr.f32.mxu0 0.0
        %1143 = vmatmul.mubr.f32.gmra.mrb[0].mxu0 %v999
        %v1144 = vpop.f32.mrb[0].mxu0
        %v1145 = vadd.f32 0.0, %v1144
        %v1146 = vpop.f32.mrb[0].mxu0
        %1147 = vmatprep.mubr.f32.mxu0 0.0
        %1148 = vmatmul.mubr.f32.gmra.mrb[0].mxu0 %v1002
        %v1149 = vpop.f32.mrb[0].mxu0
        %v1150 = vadd.f32 0.0, %v1149
        %v1151 = vpop.f32.mrb[0].mxu0
        %1152 = vmatprep.mubr.f32.mxu0 0.0
        %1153 = vmatmul.mubr.f32.gmra.mrb[0].mxu0 %v1005
        %v1154 = vpop.f32.mrb[0].mxu0
        %v1155 = vadd.f32 0.0, %v1154
        %v1156 = vpop.f32.mrb[0].mxu0
        %1157 = vmatprep.mubr.f32.mxu0 0.0
        %1158 = vmatmul.mubr.f32.gmra.mrb[0].mxu0 %v1008
        %v1159 = vpop.f32.mrb[0].mxu0
        %v1160 = vadd.f32 0.0, %v1159
        %v1161 = vpop.f32.mrb[0].mxu0
        %1162 = vdwg.mxu0
        %1163 = vmax.xlane.f32.xlu0 %v1125
        %v1164 = vpop.xlane.xlu0 %1163
        %1165 = vmax.xlane.f32.xlu0 %v1130
        %v1166 = vpop.xlane.xlu0 %1165
        %1167 = vmax.xlane.f32.xlu0 %v1135
        %v1168 = vpop.xlane.xlu0 %1167
        %1169 = vmax.xlane.f32.xlu0 %v1140
        %v1170 = vpop.xlane.xlu0 %1169
        %1171 = vmax.xlane.f32.xlu0 %v1145
        %v1172 = vpop.xlane.xlu0 %1171
        %1173 = vmax.xlane.f32.xlu0 %v1150
        %v1174 = vpop.xlane.xlu0 %1173
        %1175 = vmax.xlane.f32.xlu0 %v1155
        %v1176 = vpop.xlane.xlu0 %1175
        %1177 = vmax.xlane.f32.xlu0 %v1160
        %v1178 = vpop.xlane.xlu0 %1177
        %v1179 = vsub.f32 %v1125, %v1164
        %v1180 = vsub.f32 %v1130, %v1166
        %v1181 = vsub.f32 %v1135, %v1168
        %v1182 = vsub.f32 %v1140, %v1170
        %v1183 = vsub.f32 %v1145, %v1172
        %v1184 = vsub.f32 %v1150, %v1174
        %v1185 = vsub.f32 %v1155, %v1176
        %v1186 = vsub.f32 %v1160, %v1178
        %v1187 = vmul.f32 %v1179, 1.442695
        %v1188 = vpow.pop %v1187
        %v1189 = vmul.f32 %v1180, 1.442695
        %v1190 = vpow.pop %v1189
        %v1191 = vmul.f32 %v1181, 1.442695
        %v1192 = vpow.pop %v1191
        %v1193 = vmul.f32 %v1182, 1.442695
        %v1194 = vpow.pop %v1193
        %v1195 = vmul.f32 %v1183, 1.442695
        %v1196 = vpow.pop %v1195
        %v1197 = vmul.f32 %v1184, 1.442695
        %v1198 = vpow.pop %v1197
        %v1199 = vmul.f32 %v1185, 1.442695
        %v1200 = vpow.pop %v1199
        %v1201 = vmul.f32 %v1186, 1.442695
        %v1202 = vpow.pop %v1201
        %1203 = vadd.xlane.f32.xlu0 %v1188
        %v1204 = vpop.xlane.xlu0 %1203
        %1205 = vadd.xlane.f32.xlu0 %v1190
        %v1206 = vpop.xlane.xlu0 %1205
        %1207 = vadd.xlane.f32.xlu0 %v1192
        %v1208 = vpop.xlane.xlu0 %1207
        %1209 = vadd.xlane.f32.xlu0 %v1194
        %v1210 = vpop.xlane.xlu0 %1209
        %1211 = vadd.xlane.f32.xlu0 %v1196
        %v1212 = vpop.xlane.xlu0 %1211
        %1213 = vadd.xlane.f32.xlu0 %v1198
        %v1214 = vpop.xlane.xlu0 %1213
        %1215 = vadd.xlane.f32.xlu0 %v1200
        %v1216 = vpop.xlane.xlu0 %1215
        %1217 = vadd.xlane.f32.xlu0 %v1202
        %v1218 = vpop.xlane.xlu0 %1217
        %v1219 = vrcp.pop %v1204
        %v1220 = vrcp.pop %v1206
        %v1221 = vrcp.pop %v1208
        %v1222 = vrcp.pop %v1210
        %v1223 = vrcp.pop %v1212
        %v1224 = vrcp.pop %v1214
        %v1225 = vrcp.pop %v1216
        %v1226 = vrcp.pop %v1218
        %v1227 = vmul.f32 %v1188, %v1219
        %v1228 = vmul.f32 %v1190, %v1220
        %v1229 = vmul.f32 %v1192, %v1221
        %v1230 = vmul.f32 %v1194, %v1222
        %v1231 = vmul.f32 %v1196, %v1223
        %v1232 = vmul.f32 %v1198, %v1224
        %v1233 = vmul.f32 %v1200, %v1225
        %v1234 = vmul.f32 %v1202, %v1226
        %1235 = vmatprep.subr.mxu0 0.0
        %1236 = vmatpush1.msra.mxu0 %v899
        %1237 = vmatprep.subr.mxu0 0.0
        %1238 = vmatpush1.msra.mxu0 %v904
        %1239 = vmatprep.subr.mxu0 0.0
        %1240 = vmatpush1.msra.mxu0 %v909
        %1241 = vmatprep.subr.mxu0 0.0
        %1242 = vmatpush1.msra.mxu0 %v914
        %1243 = vmatprep.subr.mxu0 0.0
        %1244 = vmatpush1.msra.mxu0 %v919
        %1245 = vmatprep.subr.mxu0 0.0
        %1246 = vmatpush1.msra.mxu0 %v924
        %1247 = vmatprep.subr.mxu0 0.0
        %1248 = vmatpush1.msra.mxu0 %v929
        %1249 = vmatprep.subr.mxu0 0.0
        %1250 = vmatpush1.msra.mxu0 %v934
        %1251 = vmatprep.subr.mxu0 0.0
        %1252 = vmatpush1.msra.mxu0 %v939
        %1253 = vmatprep.subr.mxu0 0.0
        %1254 = vmatpush1.msra.mxu0 %v944
        %1255 = vmatprep.subr.mxu0 0.0
        %1256 = vmatpush1.msra.mxu0 %v949
        %1257 = vmatprep.subr.mxu0 0.0
        %1258 = vmatpush1.msra.mxu0 %v954
        %1259 = vmatprep.subr.mxu0 0.0
        %1260 = vmatpush1.msra.mxu0 %v959
        %1261 = vmatprep.subr.mxu0 0.0
        %1262 = vmatpush1.msra.mxu0 %v964
        %1263 = vmatprep.subr.mxu0 0.0
        %1264 = vmatpush1.msra.mxu0 %v969
        %1265 = vmatprep.subr.mxu0 0.0
        %1266 = vmatpush1.msra.mxu0 %v974
        %1267 = vmatprep.subr.mxu0 0.0
        %1268 = vmatpush1.msra.mxu0 0.0
        %1269 = vmatprep.subr.mxu0 0.0
        %1270 = vmatpush1.msra.mxu0 0.0
        %1271 = vmatprep.subr.mxu0 0.0
        %1272 = vmatpush1.msra.mxu0 0.0
        %1273 = vmatprep.subr.mxu0 0.0
        %1274 = vmatpush1.msra.mxu0 0.0
        %1275 = vmatprep.subr.mxu0 0.0
        %1276 = vmatpush1.msra.mxu0 0.0
        %1277 = vmatprep.subr.mxu0 0.0
        %1278 = vmatpush1.msra.mxu0 0.0
        %1279 = vmatprep.subr.mxu0 0.0
        %1280 = vmatpush1.msra.mxu0 0.0
        %1281 = vmatprep.subr.mxu0 0.0
        %1282 = vmatpush1.msra.mxu0 0.0
        %1283 = vmatprep.subr.mxu0 0.0
        %1284 = vmatpush1.msra.mxu0 0.0
        %1285 = vmatprep.subr.mxu0 0.0
        %1286 = vmatpush1.msra.mxu0 0.0
        %1287 = vmatprep.subr.mxu0 0.0
        %1288 = vmatpush1.msra.mxu0 0.0
        %1289 = vmatprep.subr.mxu0 0.0
        %1290 = vmatpush1.msra.mxu0 0.0
        %1291 = vmatprep.subr.mxu0 0.0
        %1292 = vmatpush1.msra.mxu0 0.0
        %1293 = vmatprep.subr.mxu0 0.0
        %1294 = vmatpush1.msra.mxu0 0.0
        %1295 = vmatprep.subr.mxu0 0.0
        %1296 = vmatpush1.msra.mxu0 0.0
        %1297 = vmatprep.subr.mxu0 0.0
        %1298 = vmatpush1.msra.mxu0 0.0
        %1299 = vmatprep.mubr.f32.mxu0 0.0
        %1300 = vmatmul.mubr.f32.gmra.mrb[0].mxu0 %v1227
        %v1301 = vpop.f32.mrb[0].mxu0
        %v1302 = vadd.f32 0.0, %v1301
        %v1303 = vpop.f32.mrb[0].mxu0
        %1304 = vmatprep.mubr.f32.mxu0 0.0
        %1305 = vmatmul.mubr.f32.gmra.mrb[0].mxu0 %v1228
        %v1306 = vpop.f32.mrb[0].mxu0
        %v1307 = vadd.f32 0.0, %v1306
        %v1308 = vpop.f32.mrb[0].mxu0
        %1309 = vmatprep.mubr.f32.mxu0 0.0
        %1310 = vmatmul.mubr.f32.gmra.mrb[0].mxu0 %v1229
        %v1311 = vpop.f32.mrb[0].mxu0
        %v1312 = vadd.f32 0.0, %v1311
        %v1313 = vpop.f32.mrb[0].mxu0
        %1314 = vmatprep.mubr.f32.mxu0 0.0
        %1315 = vmatmul.mubr.f32.gmra.mrb[0].mxu0 %v1230
        %v1316 = vpop.f32.mrb[0].mxu0
        %v1317 = vadd.f32 0.0, %v1316
        %v1318 = vpop.f32.mrb[0].mxu0
        %1319 = vmatprep.mubr.f32.mxu0 0.0
        %1320 = vmatmul.mubr.f32.gmra.mrb[0].mxu0 %v1231
        %v1321 = vpop.f32.mrb[0].mxu0
        %v1322 = vadd.f32 0.0, %v1321
        %v1323 = vpop.f32.mrb[0].mxu0
        %1324 = vmatprep.mubr.f32.mxu0 0.0
        %1325 = vmatmul.mubr.f32.gmra.mrb[0].mxu0 %v1232
        %v1326 = vpop.f32.mrb[0].mxu0
        %v1327 = vadd.f32 0.0, %v1326
        %v1328 = vpop.f32.mrb[0].mxu0
        %1329 = vmatprep.mubr.f32.mxu0 0.0
        %1330 = vmatmul.mubr.f32.gmra.mrb[0].mxu0 %v1233
        %v1331 = vpop.f32.mrb[0].mxu0
        %v1332 = vadd.f32 0.0, %v1331
        %v1333 = vpop.f32.mrb[0].mxu0
        %1334 = vmatprep.mubr.f32.mxu0 0.0
        %1335 = vmatmul.mubr.f32.gmra.mrb[0].mxu0 %v1234
        %v1336 = vpop.f32.mrb[0].mxu0
        %v1337 = vadd.f32 0.0, %v1336
        %v1338 = vpop.f32.mrb[0].mxu0
        %1339 = vdwg.mxu0
        %v1340 = vld [vmem:[#allocation2] sm:$0xff]
        %v1341 = vld [vmem:[#allocation2 + $0x8] sm:$0xff]
        %v1342 = vld [vmem:[#allocation2 + $0x10] sm:$0xff]
        %v1343 = vld [vmem:[#allocation2 + $0x18] sm:$0xff]
        %v1344 = vld [vmem:[#allocation2 + $0x20] sm:$0xff]
        %v1345 = vld [vmem:[#allocation2 + $0x28] sm:$0xff]
        %v1346 = vld [vmem:[#allocation2 + $0x30] sm:$0xff]
        %v1347 = vld [vmem:[#allocation2 + $0x38] sm:$0xff]
        %v1348 = vld [vmem:[%s464] sm:$0xff]
        %v1349 = vld [vmem:[%s464 + $0x8] sm:$0xff]
        %v1350 = vld [vmem:[%s464 + $0x10] sm:$0xff]
        %v1351 = vld [vmem:[%s464 + $0x18] sm:$0xff]
        %v1353 = vsel %vm985, %v1302, 0
        %v1356 = vsel %vm985, %v1307, 0
        %v1359 = vsel %vm985, %v1312, 0
        %v1362 = vsel %vm985, %v1317, 0
        %v1365 = vsel %vm985, %v1322, 0
        %v1368 = vsel %vm985, %v1327, 0
        %v1371 = vsel %vm985, %v1332, 0
        %v1374 = vsel %vm985, %v1337, 0
        %1376 = vmatprep.subr.mxu0 0.0
        %1377 = vmatpush1.msra.mxu0 %v1348
        %1378 = vmatprep.subr.mxu0 0.0
        %1379 = vmatpush1.msra.mxu0 %v1349
        %1380 = vmatprep.subr.mxu0 0.0
        %1381 = vmatpush1.msra.mxu0 %v1350
        %1382 = vmatprep.subr.mxu0 0.0
        %1383 = vmatpush1.msra.mxu0 %v1351
        %1384 = vmatprep.subr.mxu0 0.0
        %1385 = vmatpush1.msra.mxu0 0.0
        %1386 = vmatprep.subr.mxu0 0.0
        %1387 = vmatpush1.msra.mxu0 0.0
        %1388 = vmatprep.subr.mxu0 0.0
        %1389 = vmatpush1.msra.mxu0 0.0
        %1390 = vmatprep.subr.mxu0 0.0
        %1391 = vmatpush1.msra.mxu0 0.0
        %1392 = vmatprep.subr.mxu0 0.0
        %1393 = vmatpush1.msra.mxu0 0.0
        %1394 = vmatprep.subr.mxu0 0.0
        %1395 = vmatpush1.msra.mxu0 0.0
        %1396 = vmatprep.subr.mxu0 0.0
        %1397 = vmatpush1.msra.mxu0 0.0
        %1398 = vmatprep.subr.mxu0 0.0
        %1399 = vmatpush1.msra.mxu0 0.0
        %1400 = vmatprep.subr.mxu0 0.0
        %1401 = vmatpush1.msra.mxu0 0.0
        %1402 = vmatprep.subr.mxu0 0.0
        %1403 = vmatpush1.msra.mxu0 0.0
        %1404 = vmatprep.subr.mxu0 0.0
        %1405 = vmatpush1.msra.mxu0 0.0
        %1406 = vmatprep.subr.mxu0 0.0
        %1407 = vmatpush1.msra.mxu0 0.0
        %1408 = vmatprep.subr.mxu0 0.0
        %1409 = vmatpush1.msra.mxu0 0.0
        %1410 = vmatprep.subr.mxu0 0.0
        %1411 = vmatpush1.msra.mxu0 0.0
        %1412 = vmatprep.subr.mxu0 0.0
        %1413 = vmatpush1.msra.mxu0 0.0
        %1414 = vmatprep.subr.mxu0 0.0
        %1415 = vmatpush1.msra.mxu0 0.0
        %1416 = vmatprep.subr.mxu0 0.0
        %1417 = vmatpush1.msra.mxu0 0.0
        %1418 = vmatprep.subr.mxu0 0.0
        %1419 = vmatpush1.msra.mxu0 0.0
        %1420 = vmatprep.subr.mxu0 0.0
        %1421 = vmatpush1.msra.mxu0 0.0
        %1422 = vmatprep.subr.mxu0 0.0
        %1423 = vmatpush1.msra.mxu0 0.0
        %1424 = vmatprep.subr.mxu0 0.0
        %1425 = vmatpush1.msra.mxu0 0.0
        %1426 = vmatprep.subr.mxu0 0.0
        %1427 = vmatpush1.msra.mxu0 0.0
        %1428 = vmatprep.subr.mxu0 0.0
        %1429 = vmatpush1.msra.mxu0 0.0
        %1430 = vmatprep.subr.mxu0 0.0
        %1431 = vmatpush1.msra.mxu0 0.0
        %1432 = vmatprep.subr.mxu0 0.0
        %1433 = vmatpush1.msra.mxu0 0.0
        %1434 = vmatprep.subr.mxu0 0.0
        %1435 = vmatpush1.msra.mxu0 0.0
        %1436 = vmatprep.subr.mxu0 0.0
        %1437 = vmatpush1.msra.mxu0 0.0
        %1438 = vmatprep.subr.mxu0 0.0
        %1439 = vmatpush1.msra.mxu0 0.0
        %1440 = vmatprep.mubr.f32.mxu0 0.0
        %1441 = vmatmul.mubr.f32.gmra.mrb[0].mxu0 %v1353
        %v1442 = vpop.f32.mrb[0].mxu0
        %v1443 = vadd.f32 0.0, %v1442
        %v1444 = vpop.f32.mrb[0].mxu0
        %1445 = vmatprep.mubr.f32.mxu0 0.0
        %1446 = vmatmul.mubr.f32.gmra.mrb[0].mxu0 %v1356
        %v1447 = vpop.f32.mrb[0].mxu0
        %v1448 = vadd.f32 0.0, %v1447
        %v1449 = vpop.f32.mrb[0].mxu0
        %1450 = vmatprep.mubr.f32.mxu0 0.0
        %1451 = vmatmul.mubr.f32.gmra.mrb[0].mxu0 %v1359
        %v1452 = vpop.f32.mrb[0].mxu0
        %v1453 = vadd.f32 0.0, %v1452
        %v1454 = vpop.f32.mrb[0].mxu0
        %1455 = vmatprep.mubr.f32.mxu0 0.0
        %1456 = vmatmul.mubr.f32.gmra.mrb[0].mxu0 %v1362
        %v1457 = vpop.f32.mrb[0].mxu0
        %v1458 = vadd.f32 0.0, %v1457
        %v1459 = vpop.f32.mrb[0].mxu0
        %1460 = vmatprep.mubr.f32.mxu0 0.0
        %1461 = vmatmul.mubr.f32.gmra.mrb[0].mxu0 %v1365
        %v1462 = vpop.f32.mrb[0].mxu0
        %v1463 = vadd.f32 0.0, %v1462
        %v1464 = vpop.f32.mrb[0].mxu0
        %1465 = vmatprep.mubr.f32.mxu0 0.0
        %1466 = vmatmul.mubr.f32.gmra.mrb[0].mxu0 %v1368
        %v1467 = vpop.f32.mrb[0].mxu0
        %v1468 = vadd.f32 0.0, %v1467
        %v1469 = vpop.f32.mrb[0].mxu0
        %1470 = vmatprep.mubr.f32.mxu0 0.0
        %1471 = vmatmul.mubr.f32.gmra.mrb[0].mxu0 %v1371
        %v1472 = vpop.f32.mrb[0].mxu0
        %v1473 = vadd.f32 0.0, %v1472
        %v1474 = vpop.f32.mrb[0].mxu0
        %1475 = vmatprep.mubr.f32.mxu0 0.0
        %1476 = vmatmul.mubr.f32.gmra.mrb[0].mxu0 %v1374
        %v1477 = vpop.f32.mrb[0].mxu0
        %v1478 = vadd.f32 0.0, %v1477
        %v1479 = vpop.f32.mrb[0].mxu0
        %1480 = vdwg.mxu0
        %v1481 = vadd.f32 %v1340, %v1443
        %v1482 = vadd.f32 %v1341, %v1448
        %v1483 = vadd.f32 %v1342, %v1453
        %v1484 = vadd.f32 %v1343, %v1458
        %v1485 = vadd.f32 %v1344, %v1463
        %v1486 = vadd.f32 %v1345, %v1468
        %v1487 = vadd.f32 %v1346, %v1473
        %v1488 = vadd.f32 %v1347, %v1478
        %1489 = vst [vmem:[#allocation2] sm:$0xff] %v1481
        %1490 = vst [vmem:[#allocation2 + $0x8] sm:$0xff] %v1482
        %1491 = vst [vmem:[#allocation2 + $0x10] sm:$0xff] %v1483
        %1492 = vst [vmem:[#allocation2 + $0x18] sm:$0xff] %v1484
        %1493 = vst [vmem:[#allocation2 + $0x20] sm:$0xff] %v1485
        %1494 = vst [vmem:[#allocation2 + $0x28] sm:$0xff] %v1486
        %1495 = vst [vmem:[#allocation2 + $0x30] sm:$0xff] %v1487
        %1496 = vst [vmem:[#allocation2 + $0x38] sm:$0xff] %v1488
        %p1497 = scmp.eq.s32.totalorder %s30, 3
        // Predicated region
        $region61: #{tpu_custom_call.1} parent=55 // pred_check
          %p1498 = pneg %p1497
        $region62: #{tpu_custom_call.1} parent=55 // pred_check_branch
          %1500 = sbr.rel (%p1498) target = $region64
        $region63: #{tpu_custom_call.1} parent=55 // pred_region
          %v1501 = vld [vmem:[#allocation2] sm:$0xff]
          %v1502 = vld [vmem:[#allocation2 + $0x8] sm:$0xff]
          %v1503 = vld [vmem:[#allocation2 + $0x10] sm:$0xff]
          %v1504 = vld [vmem:[#allocation2 + $0x18] sm:$0xff]
          %v1505 = vld [vmem:[#allocation2 + $0x20] sm:$0xff]
          %v1506 = vld [vmem:[#allocation2 + $0x28] sm:$0xff]
          %v1507 = vld [vmem:[#allocation2 + $0x30] sm:$0xff]
          %v1508 = vld [vmem:[#allocation2 + $0x38] sm:$0xff]
          %v1509 = vld [vmem:[%s8] sm:$0x1]
          %v1511 = vlaneseq
          %v1512 = vshrl.u32 %v1511, 7
          %v1513 = vsub.s32 0, %v1512
          %v1514 = vrot.slane %v1509, %v1513
          %v1516 = vadd.f32 %v1501, %v1514
          %v1517 = vadd.f32 %v1502, %v1514
          %v1518 = vadd.f32 %v1503, %v1514
          %v1519 = vadd.f32 %v1504, %v1514
          %v1520 = vadd.f32 %v1505, %v1514
          %v1521 = vadd.f32 %v1506, %v1514
          %v1522 = vadd.f32 %v1507, %v1514
          %v1523 = vadd.f32 %v1508, %v1514
          %1524 = vst [vmem:[%s439] sm:$0xff] %v1516
          %1525 = vst [vmem:[%s439 + $0x8] sm:$0xff] %v1517
          %1526 = vst [vmem:[%s439 + $0x10] sm:$0xff] %v1518
          %1527 = vst [vmem:[%s439 + $0x18] sm:$0xff] %v1519
          %1528 = vst [vmem:[%s439 + $0x20] sm:$0xff] %v1520
          %1529 = vst [vmem:[%s439 + $0x28] sm:$0xff] %v1521
          %1530 = vst [vmem:[%s439 + $0x30] sm:$0xff] %v1522
          %1531 = vst [vmem:[%s439 + $0x38] sm:$0xff] %v1523
        $region64: #{tpu_custom_call.1} parent=55 // pred_fallthru
          _
        %s1532 = sand.u32 %s281, 1
        %s1533 = scalar_lea.sflag [#allocation4], %s1532
        %s1534 = sand.u32 %s281, 1
        %s1535 = smul.addr %s1534, 64
        %s1536 = scalar_lea.vmem [#allocation3], %s1535
        // Predicated region
        $region65: #{tpu_custom_call.1} parent=55 // pred_check
          %p1537 = pneg %p291
        $region66: #{tpu_custom_call.1} parent=55 // pred_check_branch
          %1539 = sbr.rel (%p1537) target = $region68
        $region67: #{tpu_custom_call.1} parent=55 // pred_region
          %s1540 = smul.u32 8, %s29
          %s1542 = ssub.s32 1024, 1024
          %1543 = vsyncadd %s1533, %s1542
          %s1544 = smul.addr %s28, 16
          %s1545 = sadd.s32 %s1540, %s1544
          %s1546 = smul.addr %s1545, 128
          %s1547 = scalar_lea.hbm %s9, %s1546
          %s1548 = sshll.u32 %s1536, 4
          %s1549 = int_to_ptr.vmem [resolvable:$true] %s1548
          %1554 = dma.vmem_to_hbm [thread:$0]  %s1549, 1024, %s1547, %s1533, 128, 128, 8
        $region68: #{tpu_custom_call.1} parent=55 // pred_fallthru
          _
      $region56: #{tpu_custom_call.1} parent=5 // pred_fallthru
        _
      %p1555 = scmp.le.s32.totalorder 2, %s18
      // Predicated region
      $region69: #{tpu_custom_call.1} parent=5 // pred_check
        %p1556 = pneg %p1555
      $region70: #{tpu_custom_call.1} parent=5 // pred_check_branch
        %1558 = sbr.rel (%p1556) target = $region72
      $region71: #{tpu_custom_call.1} parent=5 // pred_region
        %s1559 = ssub.s32 %s18, 2
        // Predicated region
        $region73: #{tpu_custom_call.1} parent=71 // pred_check
          %p1560 = pneg %p297
        $region74: #{tpu_custom_call.1} parent=71 // pred_check_branch
          %1562 = sbr.rel (%p1560) target = $region76
        $region75: #{tpu_custom_call.1} parent=71 // pred_region
          %s1563 = sand.u32 %s282, 1
          %s1564 = scalar_lea.sflag [#allocation4], %s1563
          %s1565 = sand.u32 %s282, 1
          %s1566 = smul.addr %s1565, 64
          %s1567 = scalar_lea.vmem [#allocation3], %s1566
          %1568 = dma.done %s1564, 1024
        $region76: #{tpu_custom_call.1} parent=71 // pred_fallthru
          _
      $region72: #{tpu_custom_call.1} parent=5 // pred_fallthru
        _
    $region6: #{tpu_custom_call.1} parent=1 // loop_footer
      %s22 = sadd.s32 1, %s18
    $region7: #{tpu_custom_call.1} parent=1 // loop_footer_branch
      %17 = sbr.rel target = $region3
    $region8: #{tpu_custom_call.1} parent=1 // loop_exit
      _
    %1569 = vsyncpa [#allocation4], 1
    %s1570 = scalar_lea.sflag [#allocation4], 1
    %1571 = vsyncpa %s1570, 1

</llo_original>
